<compile_context>
chip_gen: v7x
topology: tpu7x:2x2x1
jax: 0.10.0
libtpu: 0.0.40
codegen_flags: <defaults>
</compile_context>

<pallas_src>
import jax
import jax.numpy as jnp
from jax.experimental import pallas as pl
from jax.experimental.pallas import tpu as pltpu

FEAT_CHANNELS = 1280   # efficientnet_b0: backbone.classifier[1].in_features
OUT_DIM = 128          # module default out_dim


def _round_up(x, m):
    return ((x + m - 1) // m) * m


def _head_kernel(x_ref, w_ref, b_ref, o_ref):
    # x_ref: (TB, H, W, C)      -- channels-last feature tile (C on lanes, W on sublanes)
    # w_ref: (C, out_dim) f32   -- fc weight^T, pre-scaled by 1/(H*W) in the wrapper
    # b_ref: (1, out_dim) f32   -- fc bias
    # o_ref: (TB, out_dim) f32
    x = x_ref[...].astype(jnp.float32)
    # AdaptiveAvgPool2d(1) + squeeze: spatial reduction.  The 1/HW scale lives in w_ref,
    # so a plain sum suffices (saves a per-tile VPU multiply).
    pooled = jnp.sum(x, axis=(1, 2))                                 # (TB, C)
    # nn.Linear: pooled @ (W^T / HW) + b   (MXU matmul, f32 accumulation)
    y = jnp.dot(pooled, w_ref[...], preferred_element_type=jnp.float32)
    y = y + b_ref[...]                                               # broadcast bias
    # nn.ReLU
    o_ref[...] = jnp.maximum(y, 0.0).astype(o_ref.dtype)


def _vmem_budget_bytes():
    """Generation-aware VMEM budget (per TensorCore) with headroom under physical."""
    try:
        cap = int(pltpu.get_tpu_info().vmem_capacity_bytes)
    except Exception:
        cap = 64 * 1024 * 1024          # unknown chip: assume the smallest (v7x-like)
    if cap >= 96 * 1024 * 1024:         # v5e / v6e: 128 MiB physical per TensorCore
        return 64 * 1024 * 1024
    return 40 * 1024 * 1024             # v7x: 64 MiB physical per TensorCore


def eff_sign_branch_head(feat, fc_weight, fc_bias, *, data_format="NHWC", batch_tile=None):
    """Fused AdaptiveAvgPool2d(1) + Linear + ReLU head.

    feat      : (B, H, W, C) NHWC (preferred) or (B, C, H, W) NCHW, float32/bfloat16
                -- output of the frozen EfficientNet-B0 `features` backbone.
    fc_weight : (out_dim, C) float32 -- torch nn.Linear weight convention.
    fc_bias   : (out_dim,)   float32.
    returns   : (B, out_dim) float32.
    """
    if data_format == "NCHW":
        # Single transpose; XLA fuses it into the producer of the feature map, so the
        # kernel always sees a channels-last, lane-dense (C multiple of 128) layout.
        feat = jnp.transpose(feat, (0, 2, 3, 1))
    elif data_format != "NHWC":
        raise ValueError(f"unsupported data_format: {data_format}")

    B, H, W, C = feat.shape
    out_dim = fc_weight.shape[0]
    HW = H * W

    # Fold the AdaptiveAvgPool2d 1/HW scale into the transposed weight.
    w = jnp.transpose(fc_weight, (1, 0)).astype(jnp.float32) * (1.0 / HW)   # (C, out_dim)
    b = fc_bias.reshape(1, out_dim).astype(jnp.float32)

    # --- VMEM-aware batch-tile sizing (padded lane/sublane extents, all buffers) -----
    itemsize = feat.dtype.itemsize
    c_pad = _round_up(C, 128)                     # lane padding (C=1280 -> none)
    w_pad = _round_up(W, 8)                       # sublane padding of the x tile
    od_pad = _round_up(out_dim, 128)
    x_row_bytes = H * w_pad * c_pad * itemsize    # one batch row of the x tile in VMEM
    out_row_bytes = od_pad * 4
    # Resident, double-buffered weight + bias (constant index maps, never re-fetched).
    resident = 2 * c_pad * od_pad * 4 + 2 * 8 * od_pad * 4
    budget = _vmem_budget_bytes()
    if batch_tile is None:
        per_row = 2 * x_row_bytes + 2 * out_row_bytes     # double-buffered x + out
        tb_cap = max(8, (((budget - resident) // per_row) // 8) * 8)
        batch_tile = min(tb_cap, _round_up(B, 8), 128)
    TB = batch_tile
    assert TB % 8 == 0, "batch_tile must be a multiple of 8"

    # Pad batch to a multiple of TB (pad rows are sliced off below).
    Bp = _round_up(B, TB)
    x = feat
    if Bp != B:
        x = jnp.pad(x, ((0, Bp - B), (0, 0), (0, 0), (0, 0)))

    grid = (Bp // TB,)

    cost = pl.CostEstimate(
        flops=Bp * HW * C + 2 * Bp * C * out_dim + 2 * Bp * out_dim,
        transcendentals=0,
        bytes_accessed=(Bp * HW * C * itemsize + C * out_dim * 4
                        + out_dim * 4 + Bp * out_dim * 4),
    )

    out = pl.pallas_call(
        _head_kernel,
        out_shape=jax.ShapeDtypeStruct((Bp, out_dim), jnp.float32),
        grid=grid,
        in_specs=[
            pl.BlockSpec((TB, H, W, C), lambda i: (i, 0, 0, 0)),
            pl.BlockSpec((C, out_dim), lambda i: (0, 0)),   # constant index: VMEM-resident
            pl.BlockSpec((1, out_dim), lambda i: (0, 0)),   # constant index: VMEM-resident
        ],
        out_specs=pl.BlockSpec((TB, out_dim), lambda i: (i, 0)),
        compiler_params=pltpu.CompilerParams(
            dimension_semantics=("parallel",),   # megacore sharding of batch tiles
            vmem_limit_bytes=budget,             # TB derivation above obeys this budget
        ),
        cost_estimate=cost,
    )(x, w, b)

    return out[:B]


def eff_sign_branch_head_auto(feat, fc_weight, fc_bias, *, data_format="NHWC",
                              min_pallas_batch=16):
    """Dispatcher: tiny batches go to plain XLA (same HBM roofline, no custom-call cost)."""
    if feat.shape[0] < min_pallas_batch:
        if data_format == "NCHW":
            feat = jnp.transpose(feat, (0, 2, 3, 1))
        pooled = jnp.mean(feat.astype(jnp.float32), axis=(1, 2))
        return jnp.maximum(pooled @ fc_weight.T.astype(jnp.float32)
                           + fc_bias.astype(jnp.float32), 0.0)
    return eff_sign_branch_head(feat, fc_weight, fc_bias, data_format=data_format)


def _init_params(out_dim=OUT_DIM, in_features=FEAT_CHANNELS):
    """Deterministic init matching the shapes declared in __init__ (nn.Linear(1280, out_dim))."""
    kw, kb = jax.random.split(jax.random.PRNGKey(0), 2)
    bound = 1.0 / jnp.sqrt(jnp.float32(in_features))  # torch Linear default U(-1/sqrt(in), ...)
    fc_weight = jax.random.uniform(kw, (out_dim, in_features), jnp.float32, -bound, bound)
    fc_bias = jax.random.uniform(kb, (out_dim,), jnp.float32, -bound, bound)
    return fc_weight, fc_bias


if __name__ == "__main__":
    # Small shapes consistent with the module: batch=2, C=1280 (fixed by efficientnet_b0),
    # 4x4 spatial stand-in for the backbone's 7x7 output grid, channels-last.
    B, H, W, C = 2, 4, 4, FEAT_CHANNELS
    key = jax.random.PRNGKey(0)
    k_feat, _ = jax.random.split(key)
    feat = jax.random.normal(k_feat, (B, H, W, C), dtype=jnp.float32)

    fc_weight, fc_bias = _init_params()

    # Pure-JAX reference for the same head.
    pooled_ref = jnp.mean(feat, axis=(1, 2))                       # (B, C)
    ref = jnp.maximum(pooled_ref @ fc_weight.T + fc_bias, 0.0)     # (B, out_dim)

    # f32 channels-last path.
    out = jax.block_until_ready(eff_sign_branch_head(feat, fc_weight, fc_bias))
    assert out.shape == (B, OUT_DIM), out.shape
    assert jnp.allclose(out, ref, atol=1e-4, rtol=1e-4), float(jnp.max(jnp.abs(out - ref)))

    # bf16 feature DMA (halves the HBM bytes of the dominant transfer); f32 accumulation.
    out_bf16 = jax.block_until_ready(
        eff_sign_branch_head(feat.astype(jnp.bfloat16), fc_weight, fc_bias))
    assert jnp.allclose(out_bf16, ref, atol=3e-2, rtol=3e-2), \
        float(jnp.max(jnp.abs(out_bf16 - ref)))

    # NCHW adapter path (single transpose, fused into the producer by XLA).
    out_nchw = jax.block_until_ready(
        eff_sign_branch_head(jnp.transpose(feat, (0, 3, 1, 2)), fc_weight, fc_bias,
                             data_format="NCHW"))
    assert jnp.allclose(out_nchw, ref, atol=1e-4, rtol=1e-4)

    print("KERNEL_OK")
</pallas_src>

<mosaic_0001>
module attributes {stable_mosaic.version = 11 : i64} {
  func.func @_head_kernel(%arg0: i32, %arg1: memref<8x4x4x1280xf32, #tpu.memory_space<vmem>>, %arg2: memref<1280x128xf32, #tpu.memory_space<vmem>>, %arg3: memref<1x128xf32, #tpu.memory_space<vmem>>, %arg4: memref<8x128xf32, #tpu.memory_space<vmem>>) attributes {dimension_semantics = [#tpu.dimension_semantics<parallel>], iteration_bounds = array<i64: 1>, scalar_prefetch = 0 : i64, scratch_operands = 0 : i64, tpu.core_type = #tpu.core_type<tc>, window_params = [{transform_indices = @transform_0, window_bounds = array<i64: 8, 4, 4, 1280>}, {pipeline_mode = #tpu.pipeline_mode<synchronous>, transform_indices = @transform_1, window_bounds = array<i64: 1280, 128>}, {pipeline_mode = #tpu.pipeline_mode<synchronous>, transform_indices = @transform_2, window_bounds = array<i64: 1, 128>}, {transform_indices = @transform_3, window_bounds = array<i64: 8, 128>}]} {
    %c0 = arith.constant 0 : index
    %c0_0 = arith.constant 0 : index
    %c0_1 = arith.constant 0 : index
    %c0_2 = arith.constant 0 : index
    %0 = vector.load %arg1[%c0, %c0_0, %c0_1, %c0_2] : memref<8x4x4x1280xf32, #tpu.memory_space<vmem>>, vector<8x4x4x1280xf32>
    %cst = arith.constant dense<0.000000e+00> : vector<8x1280xf32>
    %1 = vector.multi_reduction <add>, %0, %cst [1, 2] : vector<8x4x4x1280xf32> to vector<8x1280xf32>
    %c0_3 = arith.constant 0 : index
    %c0_4 = arith.constant 0 : index
    %2 = vector.load %arg2[%c0_3, %c0_4] : memref<1280x128xf32, #tpu.memory_space<vmem>>, vector<1280x128xf32>
    %cst_5 = arith.constant dense<0.000000e+00> : vector<8x128xf32>
    %3 = tpu.matmul %1, %2, %cst_5 {dimension_numbers = #tpu.dot_dimension_numbers<[1], [0], [0], [1], [0, 0, 1, 1], [], []>} : vector<8x1280xf32>, vector<1280x128xf32>, vector<8x128xf32> -> vector<8x128xf32>
    %c0_6 = arith.constant 0 : index
    %c0_7 = arith.constant 0 : index
    %4 = vector.load %arg3[%c0_6, %c0_7] : memref<1x128xf32, #tpu.memory_space<vmem>>, vector<1x128xf32>
    %5 = vector.broadcast %4 : vector<1x128xf32> to vector<8x128xf32>
    %6 = arith.addf %3, %5 : vector<8x128xf32>
    %cst_8 = arith.constant 0.000000e+00 : f32
    %7 = vector.broadcast %cst_8 : f32 to vector<8x128xf32>
    %8 = arith.maximumf %6, %7 : vector<8x128xf32>
    %c0_9 = arith.constant 0 : index
    %c0_10 = arith.constant 0 : index
    %9 = vector.load %arg4[%c0_9, %c0_10] : memref<8x128xf32, #tpu.memory_space<vmem>>, vector<8x128xf32>
    tpu.vector_store %arg4[%c0_9, %c0_10], %8 {strides = array<i32>} : memref<8x128xf32, #tpu.memory_space<vmem>>, vector<8x128xf32>,
    return
  }
  func.func @transform_0(%arg0: i32) -> (i32, i32, i32, i32) {
    %c0_i32 = arith.constant 0 : i32
    %c0_i32_0 = arith.constant 0 : i32
    %c0_i32_1 = arith.constant 0 : i32
    %c0_i32_2 = arith.constant 0 : i32
    return %arg0, %c0_i32, %c0_i32_0, %c0_i32_1 : i32, i32, i32, i32
  }
  func.func @transform_1(%arg0: i32) -> (i32, i32) {
    %c0_i32 = arith.constant 0 : i32
    %c0_i32_0 = arith.constant 0 : i32
    %c0_i32_1 = arith.constant 0 : i32
    return %c0_i32, %c0_i32_0 : i32, i32
  }
  func.func @transform_2(%arg0: i32) -> (i32, i32) {
    %c0_i32 = arith.constant 0 : i32
    %c0_i32_0 = arith.constant 0 : i32
    %c0_i32_1 = arith.constant 0 : i32
    return %c0_i32, %c0_i32_0 : i32, i32
  }
  func.func @transform_3(%arg0: i32) -> (i32, i32) {
    %c0_i32 = arith.constant 0 : i32
    %c0_i32_0 = arith.constant 0 : i32
    return %arg0, %c0_i32 : i32, i32
  }
}

</mosaic_0001>

<llo_original>
// kernel: tpu_custom_call.1
$region0: #{tpu_custom_call.1}
  #allocation0 [shape = 'u32[]', space=smem, size = 0x4, offset = 0x4, fixed_abs, tag = 'smem constant byte address 0x4 - core index']
  #allocation1 [shape = 'u32[144,128]{1,0:T(1,128)}', space=vmem, size = 0x12000, scoped, tag = 'internal scratch']
  %s0 = inlined_call_operand.hbm [shape: f32[8,4,4,1280], index: 0, kind: input, shape index: {}]
  %s1 = inlined_call_operand.hbm [shape: f32[1280,128], index: 1, kind: input, shape index: {}]
  %s2 = inlined_call_operand.vmem [shape: f32[1,128], index: 2, kind: input, shape index: {}]
  %s3 = inlined_call_operand.hbm [shape: f32[8,128], index: 3, kind: output, shape index: {}]
  %s4 = sld [smem:[#allocation0]]
  $region30: #{tpu_custom_call.1} parent=0
    _
  %s6 = ssub.s32 1, %s4
  %s7 = scalar_select 0, %s6, %s4
  $region1: #{tpu_custom_call.1} parent=0
    #allocation2 [shape = 'u8[655360]{0}', space=vmem, size = 0xa0000, scoped, tag = 'input window, operand 0, single buffered']
    #allocation3 [shape = 's32[1]{0}', space=sflag, size = 0x4, scoped, tag = 'scoped memory for tpu_custom_call.1']
    #allocation4 [shape = 's32[1]{0}', space=sflag, size = 0x4, scoped, tag = 'scoped memory for tpu_custom_call.1']
    #allocation5 [shape = 'u8[655360]{0}', space=vmem, size = 0xa0000, scoped, tag = 'input window, operand 1, single buffered']
    #allocation6 [shape = 's32[1]{0}', space=sflag, size = 0x4, scoped, tag = 'scoped memory for tpu_custom_call.1']
    #allocation7 [shape = 'u8[4096]{0}', space=vmem, size = 0x1000, scoped, tag = 'output window, operand 0, single buffered']
    %8 = vsyncpa [#allocation3], 0
    %9 = vsyncpa [#allocation6], 0
    %10 = vsyncpa [#allocation4], 0
    // Predicated region
    $region2: #{tpu_custom_call.1} parent=1 // pred_check
      _
    $region3: #{tpu_custom_call.1} parent=1 // pred_check_branch
      %12 = sbr.rel (0) target = $region5
    $region4: #{tpu_custom_call.1} parent=1 // pred_region
      %s14 = ssub.s32 20480, 20480
      %15 = vsyncadd [#allocation3], %s14
      %s16 = sshll.u32 [#allocation2], 4
      %s17 = int_to_ptr.vmem [resolvable:$true] %s16
      %22 = dma.hbm_to_vmem [thread:$0]  %s0, 20480, %s17, [#allocation3], 640, 640, 40
    $region5: #{tpu_custom_call.1} parent=1 // pred_fallthru
      _
    // Predicated region
    $region6: #{tpu_custom_call.1} parent=1 // pred_check
      _
    $region7: #{tpu_custom_call.1} parent=1 // pred_check_branch
      %24 = sbr.rel (0) target = $region9
    $region8: #{tpu_custom_call.1} parent=1 // pred_region
      %s26 = ssub.s32 20480, 20480
      %27 = vsyncadd [#allocation6], %s26
      %s28 = sshll.u32 [#allocation5], 4
      %s29 = int_to_ptr.vmem [resolvable:$true] %s28
      %34 = dma.hbm_to_vmem [thread:$0]  %s1, 20480, %s29, [#allocation6], 128, 128, 8
    $region9: #{tpu_custom_call.1} parent=1 // pred_fallthru
      _
    // Predicated region
    $region10: #{tpu_custom_call.1} parent=1 // pred_check
      _
    $region11: #{tpu_custom_call.1} parent=1 // pred_check_branch
      %36 = sbr.rel (0) target = $region13
    $region12: #{tpu_custom_call.1} parent=1 // pred_region
      _
    $region13: #{tpu_custom_call.1} parent=1 // pred_fallthru
      _
    // Predicated region
    $region14: #{tpu_custom_call.1} parent=1 // pred_check
      _
    $region15: #{tpu_custom_call.1} parent=1 // pred_check_branch
      %38 = sbr.rel (0) target = $region17
    $region16: #{tpu_custom_call.1} parent=1 // pred_region
      %39 = dma.done [#allocation3], 20480
    $region17: #{tpu_custom_call.1} parent=1 // pred_fallthru
      _
    // Predicated region
    $region18: #{tpu_custom_call.1} parent=1 // pred_check
      _
    $region19: #{tpu_custom_call.1} parent=1 // pred_check_branch
      %41 = sbr.rel (0) target = $region21
    $region20: #{tpu_custom_call.1} parent=1 // pred_region
      %42 = dma.done [#allocation6], 20480
    $region21: #{tpu_custom_call.1} parent=1 // pred_fallthru
      _
    %v43 = vld [vmem:[#allocation2] sm:$0xff]
    %v44 = vld [vmem:[#allocation2 + $0x8] sm:$0xff]
    %v45 = vld [vmem:[#allocation2 + $0x10] sm:$0xff]
    %v46 = vld [vmem:[#allocation2 + $0x18] sm:$0xff]
    %v47 = vld [vmem:[#allocation2 + $0x20] sm:$0xff]
    %v48 = vld [vmem:[#allocation2 + $0x28] sm:$0xff]
    %v49 = vld [vmem:[#allocation2 + $0x30] sm:$0xff]
    %v50 = vld [vmem:[#allocation2 + $0x38] sm:$0xff]
    %v51 = vld [vmem:[#allocation2 + $0x40] sm:$0xff]
    %v52 = vld [vmem:[#allocation2 + $0x48] sm:$0xff]
    %v53 = vld [vmem:[#allocation2 + $0x50] sm:$0xff]
    %v54 = vld [vmem:[#allocation2 + $0x58] sm:$0xff]
    %v55 = vld [vmem:[#allocation2 + $0x60] sm:$0xff]
    %v56 = vld [vmem:[#allocation2 + $0x68] sm:$0xff]
    %v57 = vld [vmem:[#allocation2 + $0x70] sm:$0xff]
    %v58 = vld [vmem:[#allocation2 + $0x78] sm:$0xff]
    %v59 = vld [vmem:[#allocation2 + $0x80] sm:$0xff]
    %v60 = vld [vmem:[#allocation2 + $0x88] sm:$0xff]
    %v61 = vld [vmem:[#allocation2 + $0x90] sm:$0xff]
    %v62 = vld [vmem:[#allocation2 + $0x98] sm:$0xff]
    %v63 = vld [vmem:[#allocation2 + $0xa0] sm:$0xff]
    %v64 = vld [vmem:[#allocation2 + $0xa8] sm:$0xff]
    %v65 = vld [vmem:[#allocation2 + $0xb0] sm:$0xff]
    %v66 = vld [vmem:[#allocation2 + $0xb8] sm:$0xff]
    %v67 = vld [vmem:[#allocation2 + $0xc0] sm:$0xff]
    %v68 = vld [vmem:[#allocation2 + $0xc8] sm:$0xff]
    %v69 = vld [vmem:[#allocation2 + $0xd0] sm:$0xff]
    %v70 = vld [vmem:[#allocation2 + $0xd8] sm:$0xff]
    %v71 = vld [vmem:[#allocation2 + $0xe0] sm:$0xff]
    %v72 = vld [vmem:[#allocation2 + $0xe8] sm:$0xff]
    %v73 = vld [vmem:[#allocation2 + $0xf0] sm:$0xff]
    %v74 = vld [vmem:[#allocation2 + $0xf8] sm:$0xff]
    %v75 = vld [vmem:[#allocation2 + $0x100] sm:$0xff]
    %v76 = vld [vmem:[#allocation2 + $0x108] sm:$0xff]
    %v77 = vld [vmem:[#allocation2 + $0x110] sm:$0xff]
    %v78 = vld [vmem:[#allocation2 + $0x118] sm:$0xff]
    %v79 = vld [vmem:[#allocation2 + $0x120] sm:$0xff]
    %v80 = vld [vmem:[#allocation2 + $0x128] sm:$0xff]
    %v81 = vld [vmem:[#allocation2 + $0x130] sm:$0xff]
    %v82 = vld [vmem:[#allocation2 + $0x138] sm:$0xff]
    %v83 = vld [vmem:[#allocation2 + $0x140] sm:$0xff]
    %v84 = vld [vmem:[#allocation2 + $0x148] sm:$0xff]
    %v85 = vld [vmem:[#allocation2 + $0x150] sm:$0xff]
    %v86 = vld [vmem:[#allocation2 + $0x158] sm:$0xff]
    %v87 = vld [vmem:[#allocation2 + $0x160] sm:$0xff]
    %v88 = vld [vmem:[#allocation2 + $0x168] sm:$0xff]
    %v89 = vld [vmem:[#allocation2 + $0x170] sm:$0xff]
    %v90 = vld [vmem:[#allocation2 + $0x178] sm:$0xff]
    %v91 = vld [vmem:[#allocation2 + $0x180] sm:$0xff]
    %v92 = vld [vmem:[#allocation2 + $0x188] sm:$0xff]
    %v93 = vld [vmem:[#allocation2 + $0x190] sm:$0xff]
    %v94 = vld [vmem:[#allocation2 + $0x198] sm:$0xff]
    %v95 = vld [vmem:[#allocation2 + $0x1a0] sm:$0xff]
    %v96 = vld [vmem:[#allocation2 + $0x1a8] sm:$0xff]
    %v97 = vld [vmem:[#allocation2 + $0x1b0] sm:$0xff]
    %v98 = vld [vmem:[#allocation2 + $0x1b8] sm:$0xff]
    %v99 = vld [vmem:[#allocation2 + $0x1c0] sm:$0xff]
    %v100 = vld [vmem:[#allocation2 + $0x1c8] sm:$0xff]
    %v101 = vld [vmem:[#allocation2 + $0x1d0] sm:$0xff]
    %v102 = vld [vmem:[#allocation2 + $0x1d8] sm:$0xff]
    %v103 = vld [vmem:[#allocation2 + $0x1e0] sm:$0xff]
    %v104 = vld [vmem:[#allocation2 + $0x1e8] sm:$0xff]
    %v105 = vld [vmem:[#allocation2 + $0x1f0] sm:$0xff]
    %v106 = vld [vmem:[#allocation2 + $0x1f8] sm:$0xff]
    %v107 = vld [vmem:[#allocation2 + $0x200] sm:$0xff]
    %v108 = vld [vmem:[#allocation2 + $0x208] sm:$0xff]
    %v109 = vld [vmem:[#allocation2 + $0x210] sm:$0xff]
    %v110 = vld [vmem:[#allocation2 + $0x218] sm:$0xff]
    %v111 = vld [vmem:[#allocation2 + $0x220] sm:$0xff]
    %v112 = vld [vmem:[#allocation2 + $0x228] sm:$0xff]
    %v113 = vld [vmem:[#allocation2 + $0x230] sm:$0xff]
    %v114 = vld [vmem:[#allocation2 + $0x238] sm:$0xff]
    %v115 = vld [vmem:[#allocation2 + $0x240] sm:$0xff]
    %v116 = vld [vmem:[#allocation2 + $0x248] sm:$0xff]
    %v117 = vld [vmem:[#allocation2 + $0x250] sm:$0xff]
    %v118 = vld [vmem:[#allocation2 + $0x258] sm:$0xff]
    %v119 = vld [vmem:[#allocation2 + $0x260] sm:$0xff]
    %v120 = vld [vmem:[#allocation2 + $0x268] sm:$0xff]
    %v121 = vld [vmem:[#allocation2 + $0x270] sm:$0xff]
    %v122 = vld [vmem:[#allocation2 + $0x278] sm:$0xff]
    %v123 = vld [vmem:[#allocation2 + $0x280] sm:$0xff]
    %v124 = vld [vmem:[#allocation2 + $0x288] sm:$0xff]
    %v125 = vld [vmem:[#allocation2 + $0x290] sm:$0xff]
    %v126 = vld [vmem:[#allocation2 + $0x298] sm:$0xff]
    %v127 = vld [vmem:[#allocation2 + $0x2a0] sm:$0xff]
    %v128 = vld [vmem:[#allocation2 + $0x2a8] sm:$0xff]
    %v129 = vld [vmem:[#allocation2 + $0x2b0] sm:$0xff]
    %v130 = vld [vmem:[#allocation2 + $0x2b8] sm:$0xff]
    %v131 = vld [vmem:[#allocation2 + $0x2c0] sm:$0xff]
    %v132 = vld [vmem:[#allocation2 + $0x2c8] sm:$0xff]
    %v133 = vld [vmem:[#allocation2 + $0x2d0] sm:$0xff]
    %v134 = vld [vmem:[#allocation2 + $0x2d8] sm:$0xff]
    %v135 = vld [vmem:[#allocation2 + $0x2e0] sm:$0xff]
    %v136 = vld [vmem:[#allocation2 + $0x2e8] sm:$0xff]
    %v137 = vld [vmem:[#allocation2 + $0x2f0] sm:$0xff]
    %v138 = vld [vmem:[#allocation2 + $0x2f8] sm:$0xff]
    %v139 = vld [vmem:[#allocation2 + $0x300] sm:$0xff]
    %v140 = vld [vmem:[#allocation2 + $0x308] sm:$0xff]
    %v141 = vld [vmem:[#allocation2 + $0x310] sm:$0xff]
    %v142 = vld [vmem:[#allocation2 + $0x318] sm:$0xff]
    %v143 = vld [vmem:[#allocation2 + $0x320] sm:$0xff]
    %v144 = vld [vmem:[#allocation2 + $0x328] sm:$0xff]
    %v145 = vld [vmem:[#allocation2 + $0x330] sm:$0xff]
    %v146 = vld [vmem:[#allocation2 + $0x338] sm:$0xff]
    %v147 = vld [vmem:[#allocation2 + $0x340] sm:$0xff]
    %v148 = vld [vmem:[#allocation2 + $0x348] sm:$0xff]
    %v149 = vld [vmem:[#allocation2 + $0x350] sm:$0xff]
    %v150 = vld [vmem:[#allocation2 + $0x358] sm:$0xff]
    %v151 = vld [vmem:[#allocation2 + $0x360] sm:$0xff]
    %v152 = vld [vmem:[#allocation2 + $0x368] sm:$0xff]
    %v153 = vld [vmem:[#allocation2 + $0x370] sm:$0xff]
    %v154 = vld [vmem:[#allocation2 + $0x378] sm:$0xff]
    %v155 = vld [vmem:[#allocation2 + $0x380] sm:$0xff]
    %v156 = vld [vmem:[#allocation2 + $0x388] sm:$0xff]
    %v157 = vld [vmem:[#allocation2 + $0x390] sm:$0xff]
    %v158 = vld [vmem:[#allocation2 + $0x398] sm:$0xff]
    %v159 = vld [vmem:[#allocation2 + $0x3a0] sm:$0xff]
    %v160 = vld [vmem:[#allocation2 + $0x3a8] sm:$0xff]
    %v161 = vld [vmem:[#allocation2 + $0x3b0] sm:$0xff]
    %v162 = vld [vmem:[#allocation2 + $0x3b8] sm:$0xff]
    %v163 = vld [vmem:[#allocation2 + $0x3c0] sm:$0xff]
    %v164 = vld [vmem:[#allocation2 + $0x3c8] sm:$0xff]
    %v165 = vld [vmem:[#allocation2 + $0x3d0] sm:$0xff]
    %v166 = vld [vmem:[#allocation2 + $0x3d8] sm:$0xff]
    %v167 = vld [vmem:[#allocation2 + $0x3e0] sm:$0xff]
    %v168 = vld [vmem:[#allocation2 + $0x3e8] sm:$0xff]
    %v169 = vld [vmem:[#allocation2 + $0x3f0] sm:$0xff]
    %v170 = vld [vmem:[#allocation2 + $0x3f8] sm:$0xff]
    %v171 = vld [vmem:[#allocation2 + $0x400] sm:$0xff]
    %v172 = vld [vmem:[#allocation2 + $0x408] sm:$0xff]
    %v173 = vld [vmem:[#allocation2 + $0x410] sm:$0xff]
    %v174 = vld [vmem:[#allocation2 + $0x418] sm:$0xff]
    %v175 = vld [vmem:[#allocation2 + $0x420] sm:$0xff]
    %v176 = vld [vmem:[#allocation2 + $0x428] sm:$0xff]
    %v177 = vld [vmem:[#allocation2 + $0x430] sm:$0xff]
    %v178 = vld [vmem:[#allocation2 + $0x438] sm:$0xff]
    %v179 = vld [vmem:[#allocation2 + $0x440] sm:$0xff]
    %v180 = vld [vmem:[#allocation2 + $0x448] sm:$0xff]
    %v181 = vld [vmem:[#allocation2 + $0x450] sm:$0xff]
    %v182 = vld [vmem:[#allocation2 + $0x458] sm:$0xff]
    %v183 = vld [vmem:[#allocation2 + $0x460] sm:$0xff]
    %v184 = vld [vmem:[#allocation2 + $0x468] sm:$0xff]
    %v185 = vld [vmem:[#allocation2 + $0x470] sm:$0xff]
    %v186 = vld [vmem:[#allocation2 + $0x478] sm:$0xff]
    %v187 = vld [vmem:[#allocation2 + $0x480] sm:$0xff]
    %v188 = vld [vmem:[#allocation2 + $0x488] sm:$0xff]
    %v189 = vld [vmem:[#allocation2 + $0x490] sm:$0xff]
    %v190 = vld [vmem:[#allocation2 + $0x498] sm:$0xff]
    %v191 = vld [vmem:[#allocation2 + $0x4a0] sm:$0xff]
    %v192 = vld [vmem:[#allocation2 + $0x4a8] sm:$0xff]
    %v193 = vld [vmem:[#allocation2 + $0x4b0] sm:$0xff]
    %v194 = vld [vmem:[#allocation2 + $0x4b8] sm:$0xff]
    %v195 = vld [vmem:[#allocation2 + $0x4c0] sm:$0xff]
    %v196 = vld [vmem:[#allocation2 + $0x4c8] sm:$0xff]
    %v197 = vld [vmem:[#allocation2 + $0x4d0] sm:$0xff]
    %v198 = vld [vmem:[#allocation2 + $0x4d8] sm:$0xff]
    %v199 = vld [vmem:[#allocation2 + $0x4e0] sm:$0xff]
    %v200 = vld [vmem:[#allocation2 + $0x4e8] sm:$0xff]
    %v201 = vld [vmem:[#allocation2 + $0x4f0] sm:$0xff]
    %v202 = vld [vmem:[#allocation2 + $0x4f8] sm:$0xff]
    %v363 = vcombine.high %v43, %v43
    %v364 = vcombine.high %v44, %v44
    %v365 = vcombine.high %v45, %v45
    %v366 = vcombine.high %v46, %v46
    %v367 = vcombine.high %v47, %v47
    %v368 = vcombine.high %v48, %v48
    %v369 = vcombine.high %v49, %v49
    %v370 = vcombine.high %v50, %v50
    %v371 = vcombine.high %v51, %v51
    %v372 = vcombine.high %v52, %v52
    %v373 = vcombine.high %v53, %v53
    %v374 = vcombine.high %v54, %v54
    %v375 = vcombine.high %v55, %v55
    %v376 = vcombine.high %v56, %v56
    %v377 = vcombine.high %v57, %v57
    %v378 = vcombine.high %v58, %v58
    %v379 = vcombine.high %v59, %v59
    %v380 = vcombine.high %v60, %v60
    %v381 = vcombine.high %v61, %v61
    %v382 = vcombine.high %v62, %v62
    %v383 = vcombine.high %v63, %v63
    %v384 = vcombine.high %v64, %v64
    %v385 = vcombine.high %v65, %v65
    %v386 = vcombine.high %v66, %v66
    %v387 = vcombine.high %v67, %v67
    %v388 = vcombine.high %v68, %v68
    %v389 = vcombine.high %v69, %v69
    %v390 = vcombine.high %v70, %v70
    %v391 = vcombine.high %v71, %v71
    %v392 = vcombine.high %v72, %v72
    %v393 = vcombine.high %v73, %v73
    %v394 = vcombine.high %v74, %v74
    %v395 = vcombine.high %v75, %v75
    %v396 = vcombine.high %v76, %v76
    %v397 = vcombine.high %v77, %v77
    %v398 = vcombine.high %v78, %v78
    %v399 = vcombine.high %v79, %v79
    %v400 = vcombine.high %v80, %v80
    %v401 = vcombine.high %v81, %v81
    %v402 = vcombine.high %v82, %v82
    %v403 = vcombine.high %v83, %v83
    %v404 = vcombine.high %v84, %v84
    %v405 = vcombine.high %v85, %v85
    %v406 = vcombine.high %v86, %v86
    %v407 = vcombine.high %v87, %v87
    %v408 = vcombine.high %v88, %v88
    %v409 = vcombine.high %v89, %v89
    %v410 = vcombine.high %v90, %v90
    %v411 = vcombine.high %v91, %v91
    %v412 = vcombine.high %v92, %v92
    %v413 = vcombine.high %v93, %v93
    %v414 = vcombine.high %v94, %v94
    %v415 = vcombine.high %v95, %v95
    %v416 = vcombine.high %v96, %v96
    %v417 = vcombine.high %v97, %v97
    %v418 = vcombine.high %v98, %v98
    %v419 = vcombine.high %v99, %v99
    %v420 = vcombine.high %v100, %v100
    %v421 = vcombine.high %v101, %v101
    %v422 = vcombine.high %v102, %v102
    %v423 = vcombine.high %v103, %v103
    %v424 = vcombine.high %v104, %v104
    %v425 = vcombine.high %v105, %v105
    %v426 = vcombine.high %v106, %v106
    %v427 = vcombine.high %v107, %v107
    %v428 = vcombine.high %v108, %v108
    %v429 = vcombine.high %v109, %v109
    %v430 = vcombine.high %v110, %v110
    %v431 = vcombine.high %v111, %v111
    %v432 = vcombine.high %v112, %v112
    %v433 = vcombine.high %v113, %v113
    %v434 = vcombine.high %v114, %v114
    %v435 = vcombine.high %v115, %v115
    %v436 = vcombine.high %v116, %v116
    %v437 = vcombine.high %v117, %v117
    %v438 = vcombine.high %v118, %v118
    %v439 = vcombine.high %v119, %v119
    %v440 = vcombine.high %v120, %v120
    %v441 = vcombine.high %v121, %v121
    %v442 = vcombine.high %v122, %v122
    %v443 = vcombine.high %v123, %v123
    %v444 = vcombine.high %v124, %v124
    %v445 = vcombine.high %v125, %v125
    %v446 = vcombine.high %v126, %v126
    %v447 = vcombine.high %v127, %v127
    %v448 = vcombine.high %v128, %v128
    %v449 = vcombine.high %v129, %v129
    %v450 = vcombine.high %v130, %v130
    %v451 = vcombine.high %v131, %v131
    %v452 = vcombine.high %v132, %v132
    %v453 = vcombine.high %v133, %v133
    %v454 = vcombine.high %v134, %v134
    %v455 = vcombine.high %v135, %v135
    %v456 = vcombine.high %v136, %v136
    %v457 = vcombine.high %v137, %v137
    %v458 = vcombine.high %v138, %v138
    %v459 = vcombine.high %v139, %v139
    %v460 = vcombine.high %v140, %v140
    %v461 = vcombine.high %v141, %v141
    %v462 = vcombine.high %v142, %v142
    %v463 = vcombine.high %v143, %v143
    %v464 = vcombine.high %v144, %v144
    %v465 = vcombine.high %v145, %v145
    %v466 = vcombine.high %v146, %v146
    %v467 = vcombine.high %v147, %v147
    %v468 = vcombine.high %v148, %v148
    %v469 = vcombine.high %v149, %v149
    %v470 = vcombine.high %v150, %v150
    %v471 = vcombine.high %v151, %v151
    %v472 = vcombine.high %v152, %v152
    %v473 = vcombine.high %v153, %v153
    %v474 = vcombine.high %v154, %v154
    %v475 = vcombine.high %v155, %v155
    %v476 = vcombine.high %v156, %v156
    %v477 = vcombine.high %v157, %v157
    %v478 = vcombine.high %v158, %v158
    %v479 = vcombine.high %v159, %v159
    %v480 = vcombine.high %v160, %v160
    %v481 = vcombine.high %v161, %v161
    %v482 = vcombine.high %v162, %v162
    %v483 = vcombine.high %v163, %v163
    %v484 = vcombine.high %v164, %v164
    %v485 = vcombine.high %v165, %v165
    %v486 = vcombine.high %v166, %v166
    %v487 = vcombine.high %v167, %v167
    %v488 = vcombine.high %v168, %v168
    %v489 = vcombine.high %v169, %v169
    %v490 = vcombine.high %v170, %v170
    %v491 = vcombine.high %v171, %v171
    %v492 = vcombine.high %v172, %v172
    %v493 = vcombine.high %v173, %v173
    %v494 = vcombine.high %v174, %v174
    %v495 = vcombine.high %v175, %v175
    %v496 = vcombine.high %v176, %v176
    %v497 = vcombine.high %v177, %v177
    %v498 = vcombine.high %v178, %v178
    %v499 = vcombine.high %v179, %v179
    %v500 = vcombine.high %v180, %v180
    %v501 = vcombine.high %v181, %v181
    %v502 = vcombine.high %v182, %v182
    %v503 = vcombine.high %v183, %v183
    %v504 = vcombine.high %v184, %v184
    %v505 = vcombine.high %v185, %v185
    %v506 = vcombine.high %v186, %v186
    %v507 = vcombine.high %v187, %v187
    %v508 = vcombine.high %v188, %v188
    %v509 = vcombine.high %v189, %v189
    %v510 = vcombine.high %v190, %v190
    %v511 = vcombine.high %v191, %v191
    %v512 = vcombine.high %v192, %v192
    %v513 = vcombine.high %v193, %v193
    %v514 = vcombine.high %v194, %v194
    %v515 = vcombine.high %v195, %v195
    %v516 = vcombine.high %v196, %v196
    %v517 = vcombine.high %v197, %v197
    %v518 = vcombine.high %v198, %v198
    %v519 = vcombine.high %v199, %v199
    %v520 = vcombine.high %v200, %v200
    %v521 = vcombine.high %v201, %v201
    %v522 = vcombine.high %v202, %v202
    %vm683 = vcmask 1043456
    %v684 = vsel %vm683, %v43, 0.0
    %v685 = vsel %vm683, %v48, 0.0
    %v686 = vadd.f32 %v684, %v685
    %v687 = vsel %vm683, %v53, 0.0
    %v688 = vadd.f32 %v686, %v687
    %v689 = vsel %vm683, %v58, 0.0
    %v690 = vadd.f32 %v688, %v689
    %v691 = vrot.slane %v690, 4
    %v692 = vadd.f32 %v690, %v691
    %v693 = vrot.slane %v692, 2
    %v694 = vadd.f32 %v692, %v693
    %v695 = vrot.slane %v694, 1
    %v696 = vadd.f32 %v694, %v695
    %v697 = vsel %vm683, %v363, 0.0
    %v698 = vsel %vm683, %v368, 0.0
    %v699 = vadd.f32 %v697, %v698
    %v700 = vsel %vm683, %v373, 0.0
    %v701 = vadd.f32 %v699, %v700
    %v702 = vsel %vm683, %v378, 0.0
    %v703 = vadd.f32 %v701, %v702
    %v704 = vrot.slane %v703, 4
    %v705 = vadd.f32 %v703, %v704
    %v706 = vrot.slane %v705, 2
    %v707 = vadd.f32 %v705, %v706
    %v708 = vrot.slane %v707, 1
    %v709 = vadd.f32 %v707, %v708
    %v710 = vsel %vm683, %v44, 0.0
    %v711 = vsel %vm683, %v49, 0.0
    %v712 = vadd.f32 %v710, %v711
    %v713 = vsel %vm683, %v54, 0.0
    %v714 = vadd.f32 %v712, %v713
    %v715 = vsel %vm683, %v59, 0.0
    %v716 = vadd.f32 %v714, %v715
    %v717 = vrot.slane %v716, 4
    %v718 = vadd.f32 %v716, %v717
    %v719 = vrot.slane %v718, 2
    %v720 = vadd.f32 %v718, %v719
    %v721 = vrot.slane %v720, 1
    %v722 = vadd.f32 %v720, %v721
    %v723 = vsel %vm683, %v364, 0.0
    %v724 = vsel %vm683, %v369, 0.0
    %v725 = vadd.f32 %v723, %v724
    %v726 = vsel %vm683, %v374, 0.0
    %v727 = vadd.f32 %v725, %v726
    %v728 = vsel %vm683, %v379, 0.0
    %v729 = vadd.f32 %v727, %v728
    %v730 = vrot.slane %v729, 4
    %v731 = vadd.f32 %v729, %v730
    %v732 = vrot.slane %v731, 2
    %v733 = vadd.f32 %v731, %v732
    %v734 = vrot.slane %v733, 1
    %v735 = vadd.f32 %v733, %v734
    %v736 = vsel %vm683, %v45, 0.0
    %v737 = vsel %vm683, %v50, 0.0
    %v738 = vadd.f32 %v736, %v737
    %v739 = vsel %vm683, %v55, 0.0
    %v740 = vadd.f32 %v738, %v739
    %v741 = vsel %vm683, %v60, 0.0
    %v742 = vadd.f32 %v740, %v741
    %v743 = vrot.slane %v742, 4
    %v744 = vadd.f32 %v742, %v743
    %v745 = vrot.slane %v744, 2
    %v746 = vadd.f32 %v744, %v745
    %v747 = vrot.slane %v746, 1
    %v748 = vadd.f32 %v746, %v747
    %v749 = vsel %vm683, %v365, 0.0
    %v750 = vsel %vm683, %v370, 0.0
    %v751 = vadd.f32 %v749, %v750
    %v752 = vsel %vm683, %v375, 0.0
    %v753 = vadd.f32 %v751, %v752
    %v754 = vsel %vm683, %v380, 0.0
    %v755 = vadd.f32 %v753, %v754
    %v756 = vrot.slane %v755, 4
    %v757 = vadd.f32 %v755, %v756
    %v758 = vrot.slane %v757, 2
    %v759 = vadd.f32 %v757, %v758
    %v760 = vrot.slane %v759, 1
    %v761 = vadd.f32 %v759, %v760
    %v762 = vsel %vm683, %v46, 0.0
    %v763 = vsel %vm683, %v51, 0.0
    %v764 = vadd.f32 %v762, %v763
    %v765 = vsel %vm683, %v56, 0.0
    %v766 = vadd.f32 %v764, %v765
    %v767 = vsel %vm683, %v61, 0.0
    %v768 = vadd.f32 %v766, %v767
    %v769 = vrot.slane %v768, 4
    %v770 = vadd.f32 %v768, %v769
    %v771 = vrot.slane %v770, 2
    %v772 = vadd.f32 %v770, %v771
    %v773 = vrot.slane %v772, 1
    %v774 = vadd.f32 %v772, %v773
    %v775 = vsel %vm683, %v366, 0.0
    %v776 = vsel %vm683, %v371, 0.0
    %v777 = vadd.f32 %v775, %v776
    %v778 = vsel %vm683, %v376, 0.0
    %v779 = vadd.f32 %v777, %v778
    %v780 = vsel %vm683, %v381, 0.0
    %v781 = vadd.f32 %v779, %v780
    %v782 = vrot.slane %v781, 4
    %v783 = vadd.f32 %v781, %v782
    %v784 = vrot.slane %v783, 2
    %v785 = vadd.f32 %v783, %v784
    %v786 = vrot.slane %v785, 1
    %v787 = vadd.f32 %v785, %v786
    %v788 = vsel %vm683, %v47, 0.0
    %v789 = vsel %vm683, %v52, 0.0
    %v790 = vadd.f32 %v788, %v789
    %v791 = vsel %vm683, %v57, 0.0
    %v792 = vadd.f32 %v790, %v791
    %v793 = vsel %vm683, %v62, 0.0
    %v794 = vadd.f32 %v792, %v793
    %v795 = vrot.slane %v794, 4
    %v796 = vadd.f32 %v794, %v795
    %v797 = vrot.slane %v796, 2
    %v798 = vadd.f32 %v796, %v797
    %v799 = vrot.slane %v798, 1
    %v800 = vadd.f32 %v798, %v799
    %v801 = vsel %vm683, %v367, 0.0
    %v802 = vsel %vm683, %v372, 0.0
    %v803 = vadd.f32 %v801, %v802
    %v804 = vsel %vm683, %v377, 0.0
    %v805 = vadd.f32 %v803, %v804
    %v806 = vsel %vm683, %v382, 0.0
    %v807 = vadd.f32 %v805, %v806
    %v808 = vrot.slane %v807, 4
    %v809 = vadd.f32 %v807, %v808
    %v810 = vrot.slane %v809, 2
    %v811 = vadd.f32 %v809, %v810
    %v812 = vrot.slane %v811, 1
    %v813 = vadd.f32 %v811, %v812
    %v814 = vsel %vm683, %v63, 0.0
    %v815 = vsel %vm683, %v68, 0.0
    %v816 = vadd.f32 %v814, %v815
    %v817 = vsel %vm683, %v73, 0.0
    %v818 = vadd.f32 %v816, %v817
    %v819 = vsel %vm683, %v78, 0.0
    %v820 = vadd.f32 %v818, %v819
    %v821 = vrot.slane %v820, 4
    %v822 = vadd.f32 %v820, %v821
    %v823 = vrot.slane %v822, 2
    %v824 = vadd.f32 %v822, %v823
    %v825 = vrot.slane %v824, 1
    %v826 = vadd.f32 %v824, %v825
    %v827 = vsel %vm683, %v383, 0.0
    %v828 = vsel %vm683, %v388, 0.0
    %v829 = vadd.f32 %v827, %v828
    %v830 = vsel %vm683, %v393, 0.0
    %v831 = vadd.f32 %v829, %v830
    %v832 = vsel %vm683, %v398, 0.0
    %v833 = vadd.f32 %v831, %v832
    %v834 = vrot.slane %v833, 4
    %v835 = vadd.f32 %v833, %v834
    %v836 = vrot.slane %v835, 2
    %v837 = vadd.f32 %v835, %v836
    %v838 = vrot.slane %v837, 1
    %v839 = vadd.f32 %v837, %v838
    %v840 = vsel %vm683, %v64, 0.0
    %v841 = vsel %vm683, %v69, 0.0
    %v842 = vadd.f32 %v840, %v841
    %v843 = vsel %vm683, %v74, 0.0
    %v844 = vadd.f32 %v842, %v843
    %v845 = vsel %vm683, %v79, 0.0
    %v846 = vadd.f32 %v844, %v845
    %v847 = vrot.slane %v846, 4
    %v848 = vadd.f32 %v846, %v847
    %v849 = vrot.slane %v848, 2
    %v850 = vadd.f32 %v848, %v849
    %v851 = vrot.slane %v850, 1
    %v852 = vadd.f32 %v850, %v851
    %v853 = vsel %vm683, %v384, 0.0
    %v854 = vsel %vm683, %v389, 0.0
    %v855 = vadd.f32 %v853, %v854
    %v856 = vsel %vm683, %v394, 0.0
    %v857 = vadd.f32 %v855, %v856
    %v858 = vsel %vm683, %v399, 0.0
    %v859 = vadd.f32 %v857, %v858
    %v860 = vrot.slane %v859, 4
    %v861 = vadd.f32 %v859, %v860
    %v862 = vrot.slane %v861, 2
    %v863 = vadd.f32 %v861, %v862
    %v864 = vrot.slane %v863, 1
    %v865 = vadd.f32 %v863, %v864
    %v866 = vsel %vm683, %v65, 0.0
    %v867 = vsel %vm683, %v70, 0.0
    %v868 = vadd.f32 %v866, %v867
    %v869 = vsel %vm683, %v75, 0.0
    %v870 = vadd.f32 %v868, %v869
    %v871 = vsel %vm683, %v80, 0.0
    %v872 = vadd.f32 %v870, %v871
    %v873 = vrot.slane %v872, 4
    %v874 = vadd.f32 %v872, %v873
    %v875 = vrot.slane %v874, 2
    %v876 = vadd.f32 %v874, %v875
    %v877 = vrot.slane %v876, 1
    %v878 = vadd.f32 %v876, %v877
    %v879 = vsel %vm683, %v385, 0.0
    %v880 = vsel %vm683, %v390, 0.0
    %v881 = vadd.f32 %v879, %v880
    %v882 = vsel %vm683, %v395, 0.0
    %v883 = vadd.f32 %v881, %v882
    %v884 = vsel %vm683, %v400, 0.0
    %v885 = vadd.f32 %v883, %v884
    %v886 = vrot.slane %v885, 4
    %v887 = vadd.f32 %v885, %v886
    %v888 = vrot.slane %v887, 2
    %v889 = vadd.f32 %v887, %v888
    %v890 = vrot.slane %v889, 1
    %v891 = vadd.f32 %v889, %v890
    %v892 = vsel %vm683, %v66, 0.0
    %v893 = vsel %vm683, %v71, 0.0
    %v894 = vadd.f32 %v892, %v893
    %v895 = vsel %vm683, %v76, 0.0
    %v896 = vadd.f32 %v894, %v895
    %v897 = vsel %vm683, %v81, 0.0
    %v898 = vadd.f32 %v896, %v897
    %v899 = vrot.slane %v898, 4
    %v900 = vadd.f32 %v898, %v899
    %v901 = vrot.slane %v900, 2
    %v902 = vadd.f32 %v900, %v901
    %v903 = vrot.slane %v902, 1
    %v904 = vadd.f32 %v902, %v903
    %v905 = vsel %vm683, %v386, 0.0
    %v906 = vsel %vm683, %v391, 0.0
    %v907 = vadd.f32 %v905, %v906
    %v908 = vsel %vm683, %v396, 0.0
    %v909 = vadd.f32 %v907, %v908
    %v910 = vsel %vm683, %v401, 0.0
    %v911 = vadd.f32 %v909, %v910
    %v912 = vrot.slane %v911, 4
    %v913 = vadd.f32 %v911, %v912
    %v914 = vrot.slane %v913, 2
    %v915 = vadd.f32 %v913, %v914
    %v916 = vrot.slane %v915, 1
    %v917 = vadd.f32 %v915, %v916
    %v918 = vsel %vm683, %v67, 0.0
    %v919 = vsel %vm683, %v72, 0.0
    %v920 = vadd.f32 %v918, %v919
    %v921 = vsel %vm683, %v77, 0.0
    %v922 = vadd.f32 %v920, %v921
    %v923 = vsel %vm683, %v82, 0.0
    %v924 = vadd.f32 %v922, %v923
    %v925 = vrot.slane %v924, 4
    %v926 = vadd.f32 %v924, %v925
    %v927 = vrot.slane %v926, 2
    %v928 = vadd.f32 %v926, %v927
    %v929 = vrot.slane %v928, 1
    %v930 = vadd.f32 %v928, %v929
    %v931 = vsel %vm683, %v387, 0.0
    %v932 = vsel %vm683, %v392, 0.0
    %v933 = vadd.f32 %v931, %v932
    %v934 = vsel %vm683, %v397, 0.0
    %v935 = vadd.f32 %v933, %v934
    %v936 = vsel %vm683, %v402, 0.0
    %v937 = vadd.f32 %v935, %v936
    %v938 = vrot.slane %v937, 4
    %v939 = vadd.f32 %v937, %v938
    %v940 = vrot.slane %v939, 2
    %v941 = vadd.f32 %v939, %v940
    %v942 = vrot.slane %v941, 1
    %v943 = vadd.f32 %v941, %v942
    %v944 = vsel %vm683, %v83, 0.0
    %v945 = vsel %vm683, %v88, 0.0
    %v946 = vadd.f32 %v944, %v945
    %v947 = vsel %vm683, %v93, 0.0
    %v948 = vadd.f32 %v946, %v947
    %v949 = vsel %vm683, %v98, 0.0
    %v950 = vadd.f32 %v948, %v949
    %v951 = vrot.slane %v950, 4
    %v952 = vadd.f32 %v950, %v951
    %v953 = vrot.slane %v952, 2
    %v954 = vadd.f32 %v952, %v953
    %v955 = vrot.slane %v954, 1
    %v956 = vadd.f32 %v954, %v955
    %v957 = vsel %vm683, %v403, 0.0
    %v958 = vsel %vm683, %v408, 0.0
    %v959 = vadd.f32 %v957, %v958
    %v960 = vsel %vm683, %v413, 0.0
    %v961 = vadd.f32 %v959, %v960
    %v962 = vsel %vm683, %v418, 0.0
    %v963 = vadd.f32 %v961, %v962
    %v964 = vrot.slane %v963, 4
    %v965 = vadd.f32 %v963, %v964
    %v966 = vrot.slane %v965, 2
    %v967 = vadd.f32 %v965, %v966
    %v968 = vrot.slane %v967, 1
    %v969 = vadd.f32 %v967, %v968
    %v970 = vsel %vm683, %v84, 0.0
    %v971 = vsel %vm683, %v89, 0.0
    %v972 = vadd.f32 %v970, %v971
    %v973 = vsel %vm683, %v94, 0.0
    %v974 = vadd.f32 %v972, %v973
    %v975 = vsel %vm683, %v99, 0.0
    %v976 = vadd.f32 %v974, %v975
    %v977 = vrot.slane %v976, 4
    %v978 = vadd.f32 %v976, %v977
    %v979 = vrot.slane %v978, 2
    %v980 = vadd.f32 %v978, %v979
    %v981 = vrot.slane %v980, 1
    %v982 = vadd.f32 %v980, %v981
    %v983 = vsel %vm683, %v404, 0.0
    %v984 = vsel %vm683, %v409, 0.0
    %v985 = vadd.f32 %v983, %v984
    %v986 = vsel %vm683, %v414, 0.0
    %v987 = vadd.f32 %v985, %v986
    %v988 = vsel %vm683, %v419, 0.0
    %v989 = vadd.f32 %v987, %v988
    %v990 = vrot.slane %v989, 4
    %v991 = vadd.f32 %v989, %v990
    %v992 = vrot.slane %v991, 2
    %v993 = vadd.f32 %v991, %v992
    %v994 = vrot.slane %v993, 1
    %v995 = vadd.f32 %v993, %v994
    %v996 = vsel %vm683, %v85, 0.0
    %v997 = vsel %vm683, %v90, 0.0
    %v998 = vadd.f32 %v996, %v997
    %v999 = vsel %vm683, %v95, 0.0
    %v1000 = vadd.f32 %v998, %v999
    %v1001 = vsel %vm683, %v100, 0.0
    %v1002 = vadd.f32 %v1000, %v1001
    %v1003 = vrot.slane %v1002, 4
    %v1004 = vadd.f32 %v1002, %v1003
    %v1005 = vrot.slane %v1004, 2
    %v1006 = vadd.f32 %v1004, %v1005
    %v1007 = vrot.slane %v1006, 1
    %v1008 = vadd.f32 %v1006, %v1007
    %v1009 = vsel %vm683, %v405, 0.0
    %v1010 = vsel %vm683, %v410, 0.0
    %v1011 = vadd.f32 %v1009, %v1010
    %v1012 = vsel %vm683, %v415, 0.0
    %v1013 = vadd.f32 %v1011, %v1012
    %v1014 = vsel %vm683, %v420, 0.0
    %v1015 = vadd.f32 %v1013, %v1014
    %v1016 = vrot.slane %v1015, 4
    %v1017 = vadd.f32 %v1015, %v1016
    %v1018 = vrot.slane %v1017, 2
    %v1019 = vadd.f32 %v1017, %v1018
    %v1020 = vrot.slane %v1019, 1
    %v1021 = vadd.f32 %v1019, %v1020
    %v1022 = vsel %vm683, %v86, 0.0
    %v1023 = vsel %vm683, %v91, 0.0
    %v1024 = vadd.f32 %v1022, %v1023
    %v1025 = vsel %vm683, %v96, 0.0
    %v1026 = vadd.f32 %v1024, %v1025
    %v1027 = vsel %vm683, %v101, 0.0
    %v1028 = vadd.f32 %v1026, %v1027
    %v1029 = vrot.slane %v1028, 4
    %v1030 = vadd.f32 %v1028, %v1029
    %v1031 = vrot.slane %v1030, 2
    %v1032 = vadd.f32 %v1030, %v1031
    %v1033 = vrot.slane %v1032, 1
    %v1034 = vadd.f32 %v1032, %v1033
    %v1035 = vsel %vm683, %v406, 0.0
    %v1036 = vsel %vm683, %v411, 0.0
    %v1037 = vadd.f32 %v1035, %v1036
    %v1038 = vsel %vm683, %v416, 0.0
    %v1039 = vadd.f32 %v1037, %v1038
    %v1040 = vsel %vm683, %v421, 0.0
    %v1041 = vadd.f32 %v1039, %v1040
    %v1042 = vrot.slane %v1041, 4
    %v1043 = vadd.f32 %v1041, %v1042
    %v1044 = vrot.slane %v1043, 2
    %v1045 = vadd.f32 %v1043, %v1044
    %v1046 = vrot.slane %v1045, 1
    %v1047 = vadd.f32 %v1045, %v1046
    %v1048 = vsel %vm683, %v87, 0.0
    %v1049 = vsel %vm683, %v92, 0.0
    %v1050 = vadd.f32 %v1048, %v1049
    %v1051 = vsel %vm683, %v97, 0.0
    %v1052 = vadd.f32 %v1050, %v1051
    %v1053 = vsel %vm683, %v102, 0.0
    %v1054 = vadd.f32 %v1052, %v1053
    %v1055 = vrot.slane %v1054, 4
    %v1056 = vadd.f32 %v1054, %v1055
    %v1057 = vrot.slane %v1056, 2
    %v1058 = vadd.f32 %v1056, %v1057
    %v1059 = vrot.slane %v1058, 1
    %v1060 = vadd.f32 %v1058, %v1059
    %v1061 = vsel %vm683, %v407, 0.0
    %v1062 = vsel %vm683, %v412, 0.0
    %v1063 = vadd.f32 %v1061, %v1062
    %v1064 = vsel %vm683, %v417, 0.0
    %v1065 = vadd.f32 %v1063, %v1064
    %v1066 = vsel %vm683, %v422, 0.0
    %v1067 = vadd.f32 %v1065, %v1066
    %v1068 = vrot.slane %v1067, 4
    %v1069 = vadd.f32 %v1067, %v1068
    %v1070 = vrot.slane %v1069, 2
    %v1071 = vadd.f32 %v1069, %v1070
    %v1072 = vrot.slane %v1071, 1
    %v1073 = vadd.f32 %v1071, %v1072
    %v1074 = vsel %vm683, %v103, 0.0
    %v1075 = vsel %vm683, %v108, 0.0
    %v1076 = vadd.f32 %v1074, %v1075
    %v1077 = vsel %vm683, %v113, 0.0
    %v1078 = vadd.f32 %v1076, %v1077
    %v1079 = vsel %vm683, %v118, 0.0
    %v1080 = vadd.f32 %v1078, %v1079
    %v1081 = vrot.slane %v1080, 4
    %v1082 = vadd.f32 %v1080, %v1081
    %v1083 = vrot.slane %v1082, 2
    %v1084 = vadd.f32 %v1082, %v1083
    %v1085 = vrot.slane %v1084, 1
    %v1086 = vadd.f32 %v1084, %v1085
    %v1087 = vsel %vm683, %v423, 0.0
    %v1088 = vsel %vm683, %v428, 0.0
    %v1089 = vadd.f32 %v1087, %v1088
    %v1090 = vsel %vm683, %v433, 0.0
    %v1091 = vadd.f32 %v1089, %v1090
    %v1092 = vsel %vm683, %v438, 0.0
    %v1093 = vadd.f32 %v1091, %v1092
    %v1094 = vrot.slane %v1093, 4
    %v1095 = vadd.f32 %v1093, %v1094
    %v1096 = vrot.slane %v1095, 2
    %v1097 = vadd.f32 %v1095, %v1096
    %v1098 = vrot.slane %v1097, 1
    %v1099 = vadd.f32 %v1097, %v1098
    %v1100 = vsel %vm683, %v104, 0.0
    %v1101 = vsel %vm683, %v109, 0.0
    %v1102 = vadd.f32 %v1100, %v1101
    %v1103 = vsel %vm683, %v114, 0.0
    %v1104 = vadd.f32 %v1102, %v1103
    %v1105 = vsel %vm683, %v119, 0.0
    %v1106 = vadd.f32 %v1104, %v1105
    %v1107 = vrot.slane %v1106, 4
    %v1108 = vadd.f32 %v1106, %v1107
    %v1109 = vrot.slane %v1108, 2
    %v1110 = vadd.f32 %v1108, %v1109
    %v1111 = vrot.slane %v1110, 1
    %v1112 = vadd.f32 %v1110, %v1111
    %v1113 = vsel %vm683, %v424, 0.0
    %v1114 = vsel %vm683, %v429, 0.0
    %v1115 = vadd.f32 %v1113, %v1114
    %v1116 = vsel %vm683, %v434, 0.0
    %v1117 = vadd.f32 %v1115, %v1116
    %v1118 = vsel %vm683, %v439, 0.0
    %v1119 = vadd.f32 %v1117, %v1118
    %v1120 = vrot.slane %v1119, 4
    %v1121 = vadd.f32 %v1119, %v1120
    %v1122 = vrot.slane %v1121, 2
    %v1123 = vadd.f32 %v1121, %v1122
    %v1124 = vrot.slane %v1123, 1
    %v1125 = vadd.f32 %v1123, %v1124
    %v1126 = vsel %vm683, %v105, 0.0
    %v1127 = vsel %vm683, %v110, 0.0
    %v1128 = vadd.f32 %v1126, %v1127
    %v1129 = vsel %vm683, %v115, 0.0
    %v1130 = vadd.f32 %v1128, %v1129
    %v1131 = vsel %vm683, %v120, 0.0
    %v1132 = vadd.f32 %v1130, %v1131
    %v1133 = vrot.slane %v1132, 4
    %v1134 = vadd.f32 %v1132, %v1133
    %v1135 = vrot.slane %v1134, 2
    %v1136 = vadd.f32 %v1134, %v1135
    %v1137 = vrot.slane %v1136, 1
    %v1138 = vadd.f32 %v1136, %v1137
    %v1139 = vsel %vm683, %v425, 0.0
    %v1140 = vsel %vm683, %v430, 0.0
    %v1141 = vadd.f32 %v1139, %v1140
    %v1142 = vsel %vm683, %v435, 0.0
    %v1143 = vadd.f32 %v1141, %v1142
    %v1144 = vsel %vm683, %v440, 0.0
    %v1145 = vadd.f32 %v1143, %v1144
    %v1146 = vrot.slane %v1145, 4
    %v1147 = vadd.f32 %v1145, %v1146
    %v1148 = vrot.slane %v1147, 2
    %v1149 = vadd.f32 %v1147, %v1148
    %v1150 = vrot.slane %v1149, 1
    %v1151 = vadd.f32 %v1149, %v1150
    %v1152 = vsel %vm683, %v106, 0.0
    %v1153 = vsel %vm683, %v111, 0.0
    %v1154 = vadd.f32 %v1152, %v1153
    %v1155 = vsel %vm683, %v116, 0.0
    %v1156 = vadd.f32 %v1154, %v1155
    %v1157 = vsel %vm683, %v121, 0.0
    %v1158 = vadd.f32 %v1156, %v1157
    %v1159 = vrot.slane %v1158, 4
    %v1160 = vadd.f32 %v1158, %v1159
    %v1161 = vrot.slane %v1160, 2
    %v1162 = vadd.f32 %v1160, %v1161
    %v1163 = vrot.slane %v1162, 1
    %v1164 = vadd.f32 %v1162, %v1163
    %v1165 = vsel %vm683, %v426, 0.0
    %v1166 = vsel %vm683, %v431, 0.0
    %v1167 = vadd.f32 %v1165, %v1166
    %v1168 = vsel %vm683, %v436, 0.0
    %v1169 = vadd.f32 %v1167, %v1168
    %v1170 = vsel %vm683, %v441, 0.0
    %v1171 = vadd.f32 %v1169, %v1170
    %v1172 = vrot.slane %v1171, 4
    %v1173 = vadd.f32 %v1171, %v1172
    %v1174 = vrot.slane %v1173, 2
    %v1175 = vadd.f32 %v1173, %v1174
    %v1176 = vrot.slane %v1175, 1
    %v1177 = vadd.f32 %v1175, %v1176
    %v1178 = vsel %vm683, %v107, 0.0
    %v1179 = vsel %vm683, %v112, 0.0
    %v1180 = vadd.f32 %v1178, %v1179
    %v1181 = vsel %vm683, %v117, 0.0
    %v1182 = vadd.f32 %v1180, %v1181
    %v1183 = vsel %vm683, %v122, 0.0
    %v1184 = vadd.f32 %v1182, %v1183
    %v1185 = vrot.slane %v1184, 4
    %v1186 = vadd.f32 %v1184, %v1185
    %v1187 = vrot.slane %v1186, 2
    %v1188 = vadd.f32 %v1186, %v1187
    %v1189 = vrot.slane %v1188, 1
    %v1190 = vadd.f32 %v1188, %v1189
    %v1191 = vsel %vm683, %v427, 0.0
    %v1192 = vsel %vm683, %v432, 0.0
    %v1193 = vadd.f32 %v1191, %v1192
    %v1194 = vsel %vm683, %v437, 0.0
    %v1195 = vadd.f32 %v1193, %v1194
    %v1196 = vsel %vm683, %v442, 0.0
    %v1197 = vadd.f32 %v1195, %v1196
    %v1198 = vrot.slane %v1197, 4
    %v1199 = vadd.f32 %v1197, %v1198
    %v1200 = vrot.slane %v1199, 2
    %v1201 = vadd.f32 %v1199, %v1200
    %v1202 = vrot.slane %v1201, 1
    %v1203 = vadd.f32 %v1201, %v1202
    %v1204 = vsel %vm683, %v123, 0.0
    %v1205 = vsel %vm683, %v128, 0.0
    %v1206 = vadd.f32 %v1204, %v1205
    %v1207 = vsel %vm683, %v133, 0.0
    %v1208 = vadd.f32 %v1206, %v1207
    %v1209 = vsel %vm683, %v138, 0.0
    %v1210 = vadd.f32 %v1208, %v1209
    %v1211 = vrot.slane %v1210, 4
    %v1212 = vadd.f32 %v1210, %v1211
    %v1213 = vrot.slane %v1212, 2
    %v1214 = vadd.f32 %v1212, %v1213
    %v1215 = vrot.slane %v1214, 1
    %v1216 = vadd.f32 %v1214, %v1215
    %v1217 = vsel %vm683, %v443, 0.0
    %v1218 = vsel %vm683, %v448, 0.0
    %v1219 = vadd.f32 %v1217, %v1218
    %v1220 = vsel %vm683, %v453, 0.0
    %v1221 = vadd.f32 %v1219, %v1220
    %v1222 = vsel %vm683, %v458, 0.0
    %v1223 = vadd.f32 %v1221, %v1222
    %v1224 = vrot.slane %v1223, 4
    %v1225 = vadd.f32 %v1223, %v1224
    %v1226 = vrot.slane %v1225, 2
    %v1227 = vadd.f32 %v1225, %v1226
    %v1228 = vrot.slane %v1227, 1
    %v1229 = vadd.f32 %v1227, %v1228
    %v1230 = vsel %vm683, %v124, 0.0
    %v1231 = vsel %vm683, %v129, 0.0
    %v1232 = vadd.f32 %v1230, %v1231
    %v1233 = vsel %vm683, %v134, 0.0
    %v1234 = vadd.f32 %v1232, %v1233
    %v1235 = vsel %vm683, %v139, 0.0
    %v1236 = vadd.f32 %v1234, %v1235
    %v1237 = vrot.slane %v1236, 4
    %v1238 = vadd.f32 %v1236, %v1237
    %v1239 = vrot.slane %v1238, 2
    %v1240 = vadd.f32 %v1238, %v1239
    %v1241 = vrot.slane %v1240, 1
    %v1242 = vadd.f32 %v1240, %v1241
    %v1243 = vsel %vm683, %v444, 0.0
    %v1244 = vsel %vm683, %v449, 0.0
    %v1245 = vadd.f32 %v1243, %v1244
    %v1246 = vsel %vm683, %v454, 0.0
    %v1247 = vadd.f32 %v1245, %v1246
    %v1248 = vsel %vm683, %v459, 0.0
    %v1249 = vadd.f32 %v1247, %v1248
    %v1250 = vrot.slane %v1249, 4
    %v1251 = vadd.f32 %v1249, %v1250
    %v1252 = vrot.slane %v1251, 2
    %v1253 = vadd.f32 %v1251, %v1252
    %v1254 = vrot.slane %v1253, 1
    %v1255 = vadd.f32 %v1253, %v1254
    %v1256 = vsel %vm683, %v125, 0.0
    %v1257 = vsel %vm683, %v130, 0.0
    %v1258 = vadd.f32 %v1256, %v1257
    %v1259 = vsel %vm683, %v135, 0.0
    %v1260 = vadd.f32 %v1258, %v1259
    %v1261 = vsel %vm683, %v140, 0.0
    %v1262 = vadd.f32 %v1260, %v1261
    %v1263 = vrot.slane %v1262, 4
    %v1264 = vadd.f32 %v1262, %v1263
    %v1265 = vrot.slane %v1264, 2
    %v1266 = vadd.f32 %v1264, %v1265
    %v1267 = vrot.slane %v1266, 1
    %v1268 = vadd.f32 %v1266, %v1267
    %v1269 = vsel %vm683, %v445, 0.0
    %v1270 = vsel %vm683, %v450, 0.0
    %v1271 = vadd.f32 %v1269, %v1270
    %v1272 = vsel %vm683, %v455, 0.0
    %v1273 = vadd.f32 %v1271, %v1272
    %v1274 = vsel %vm683, %v460, 0.0
    %v1275 = vadd.f32 %v1273, %v1274
    %v1276 = vrot.slane %v1275, 4
    %v1277 = vadd.f32 %v1275, %v1276
    %v1278 = vrot.slane %v1277, 2
    %v1279 = vadd.f32 %v1277, %v1278
    %v1280 = vrot.slane %v1279, 1
    %v1281 = vadd.f32 %v1279, %v1280
    %v1282 = vsel %vm683, %v126, 0.0
    %v1283 = vsel %vm683, %v131, 0.0
    %v1284 = vadd.f32 %v1282, %v1283
    %v1285 = vsel %vm683, %v136, 0.0
    %v1286 = vadd.f32 %v1284, %v1285
    %v1287 = vsel %vm683, %v141, 0.0
    %v1288 = vadd.f32 %v1286, %v1287
    %v1289 = vrot.slane %v1288, 4
    %v1290 = vadd.f32 %v1288, %v1289
    %v1291 = vrot.slane %v1290, 2
    %v1292 = vadd.f32 %v1290, %v1291
    %v1293 = vrot.slane %v1292, 1
    %v1294 = vadd.f32 %v1292, %v1293
    %v1295 = vsel %vm683, %v446, 0.0
    %v1296 = vsel %vm683, %v451, 0.0
    %v1297 = vadd.f32 %v1295, %v1296
    %v1298 = vsel %vm683, %v456, 0.0
    %v1299 = vadd.f32 %v1297, %v1298
    %v1300 = vsel %vm683, %v461, 0.0
    %v1301 = vadd.f32 %v1299, %v1300
    %v1302 = vrot.slane %v1301, 4
    %v1303 = vadd.f32 %v1301, %v1302
    %v1304 = vrot.slane %v1303, 2
    %v1305 = vadd.f32 %v1303, %v1304
    %v1306 = vrot.slane %v1305, 1
    %v1307 = vadd.f32 %v1305, %v1306
    %v1308 = vsel %vm683, %v127, 0.0
    %v1309 = vsel %vm683, %v132, 0.0
    %v1310 = vadd.f32 %v1308, %v1309
    %v1311 = vsel %vm683, %v137, 0.0
    %v1312 = vadd.f32 %v1310, %v1311
    %v1313 = vsel %vm683, %v142, 0.0
    %v1314 = vadd.f32 %v1312, %v1313
    %v1315 = vrot.slane %v1314, 4
    %v1316 = vadd.f32 %v1314, %v1315
    %v1317 = vrot.slane %v1316, 2
    %v1318 = vadd.f32 %v1316, %v1317
    %v1319 = vrot.slane %v1318, 1
    %v1320 = vadd.f32 %v1318, %v1319
    %v1321 = vsel %vm683, %v447, 0.0
    %v1322 = vsel %vm683, %v452, 0.0
    %v1323 = vadd.f32 %v1321, %v1322
    %v1324 = vsel %vm683, %v457, 0.0
    %v1325 = vadd.f32 %v1323, %v1324
    %v1326 = vsel %vm683, %v462, 0.0
    %v1327 = vadd.f32 %v1325, %v1326
    %v1328 = vrot.slane %v1327, 4
    %v1329 = vadd.f32 %v1327, %v1328
    %v1330 = vrot.slane %v1329, 2
    %v1331 = vadd.f32 %v1329, %v1330
    %v1332 = vrot.slane %v1331, 1
    %v1333 = vadd.f32 %v1331, %v1332
    %v1334 = vsel %vm683, %v143, 0.0
    %v1335 = vsel %vm683, %v148, 0.0
    %v1336 = vadd.f32 %v1334, %v1335
    %v1337 = vsel %vm683, %v153, 0.0
    %v1338 = vadd.f32 %v1336, %v1337
    %v1339 = vsel %vm683, %v158, 0.0
    %v1340 = vadd.f32 %v1338, %v1339
    %v1341 = vrot.slane %v1340, 4
    %v1342 = vadd.f32 %v1340, %v1341
    %v1343 = vrot.slane %v1342, 2
    %v1344 = vadd.f32 %v1342, %v1343
    %v1345 = vrot.slane %v1344, 1
    %v1346 = vadd.f32 %v1344, %v1345
    %v1347 = vsel %vm683, %v463, 0.0
    %v1348 = vsel %vm683, %v468, 0.0
    %v1349 = vadd.f32 %v1347, %v1348
    %v1350 = vsel %vm683, %v473, 0.0
    %v1351 = vadd.f32 %v1349, %v1350
    %v1352 = vsel %vm683, %v478, 0.0
    %v1353 = vadd.f32 %v1351, %v1352
    %v1354 = vrot.slane %v1353, 4
    %v1355 = vadd.f32 %v1353, %v1354
    %v1356 = vrot.slane %v1355, 2
    %v1357 = vadd.f32 %v1355, %v1356
    %v1358 = vrot.slane %v1357, 1
    %v1359 = vadd.f32 %v1357, %v1358
    %v1360 = vsel %vm683, %v144, 0.0
    %v1361 = vsel %vm683, %v149, 0.0
    %v1362 = vadd.f32 %v1360, %v1361
    %v1363 = vsel %vm683, %v154, 0.0
    %v1364 = vadd.f32 %v1362, %v1363
    %v1365 = vsel %vm683, %v159, 0.0
    %v1366 = vadd.f32 %v1364, %v1365
    %v1367 = vrot.slane %v1366, 4
    %v1368 = vadd.f32 %v1366, %v1367
    %v1369 = vrot.slane %v1368, 2
    %v1370 = vadd.f32 %v1368, %v1369
    %v1371 = vrot.slane %v1370, 1
    %v1372 = vadd.f32 %v1370, %v1371
    %v1373 = vsel %vm683, %v464, 0.0
    %v1374 = vsel %vm683, %v469, 0.0
    %v1375 = vadd.f32 %v1373, %v1374
    %v1376 = vsel %vm683, %v474, 0.0
    %v1377 = vadd.f32 %v1375, %v1376
    %v1378 = vsel %vm683, %v479, 0.0
    %v1379 = vadd.f32 %v1377, %v1378
    %v1380 = vrot.slane %v1379, 4
    %v1381 = vadd.f32 %v1379, %v1380
    %v1382 = vrot.slane %v1381, 2
    %v1383 = vadd.f32 %v1381, %v1382
    %v1384 = vrot.slane %v1383, 1
    %v1385 = vadd.f32 %v1383, %v1384
    %v1386 = vsel %vm683, %v145, 0.0
    %v1387 = vsel %vm683, %v150, 0.0
    %v1388 = vadd.f32 %v1386, %v1387
    %v1389 = vsel %vm683, %v155, 0.0
    %v1390 = vadd.f32 %v1388, %v1389
    %v1391 = vsel %vm683, %v160, 0.0
    %v1392 = vadd.f32 %v1390, %v1391
    %v1393 = vrot.slane %v1392, 4
    %v1394 = vadd.f32 %v1392, %v1393
    %v1395 = vrot.slane %v1394, 2
    %v1396 = vadd.f32 %v1394, %v1395
    %v1397 = vrot.slane %v1396, 1
    %v1398 = vadd.f32 %v1396, %v1397
    %v1399 = vsel %vm683, %v465, 0.0
    %v1400 = vsel %vm683, %v470, 0.0
    %v1401 = vadd.f32 %v1399, %v1400
    %v1402 = vsel %vm683, %v475, 0.0
    %v1403 = vadd.f32 %v1401, %v1402
    %v1404 = vsel %vm683, %v480, 0.0
    %v1405 = vadd.f32 %v1403, %v1404
    %v1406 = vrot.slane %v1405, 4
    %v1407 = vadd.f32 %v1405, %v1406
    %v1408 = vrot.slane %v1407, 2
    %v1409 = vadd.f32 %v1407, %v1408
    %v1410 = vrot.slane %v1409, 1
    %v1411 = vadd.f32 %v1409, %v1410
    %v1412 = vsel %vm683, %v146, 0.0
    %v1413 = vsel %vm683, %v151, 0.0
    %v1414 = vadd.f32 %v1412, %v1413
    %v1415 = vsel %vm683, %v156, 0.0
    %v1416 = vadd.f32 %v1414, %v1415
    %v1417 = vsel %vm683, %v161, 0.0
    %v1418 = vadd.f32 %v1416, %v1417
    %v1419 = vrot.slane %v1418, 4
    %v1420 = vadd.f32 %v1418, %v1419
    %v1421 = vrot.slane %v1420, 2
    %v1422 = vadd.f32 %v1420, %v1421
    %v1423 = vrot.slane %v1422, 1
    %v1424 = vadd.f32 %v1422, %v1423
    %v1425 = vsel %vm683, %v466, 0.0
    %v1426 = vsel %vm683, %v471, 0.0
    %v1427 = vadd.f32 %v1425, %v1426
    %v1428 = vsel %vm683, %v476, 0.0
    %v1429 = vadd.f32 %v1427, %v1428
    %v1430 = vsel %vm683, %v481, 0.0
    %v1431 = vadd.f32 %v1429, %v1430
    %v1432 = vrot.slane %v1431, 4
    %v1433 = vadd.f32 %v1431, %v1432
    %v1434 = vrot.slane %v1433, 2
    %v1435 = vadd.f32 %v1433, %v1434
    %v1436 = vrot.slane %v1435, 1
    %v1437 = vadd.f32 %v1435, %v1436
    %v1438 = vsel %vm683, %v147, 0.0
    %v1439 = vsel %vm683, %v152, 0.0
    %v1440 = vadd.f32 %v1438, %v1439
    %v1441 = vsel %vm683, %v157, 0.0
    %v1442 = vadd.f32 %v1440, %v1441
    %v1443 = vsel %vm683, %v162, 0.0
    %v1444 = vadd.f32 %v1442, %v1443
    %v1445 = vrot.slane %v1444, 4
    %v1446 = vadd.f32 %v1444, %v1445
    %v1447 = vrot.slane %v1446, 2
    %v1448 = vadd.f32 %v1446, %v1447
    %v1449 = vrot.slane %v1448, 1
    %v1450 = vadd.f32 %v1448, %v1449
    %v1451 = vsel %vm683, %v467, 0.0
    %v1452 = vsel %vm683, %v472, 0.0
    %v1453 = vadd.f32 %v1451, %v1452
    %v1454 = vsel %vm683, %v477, 0.0
    %v1455 = vadd.f32 %v1453, %v1454
    %v1456 = vsel %vm683, %v482, 0.0
    %v1457 = vadd.f32 %v1455, %v1456
    %v1458 = vrot.slane %v1457, 4
    %v1459 = vadd.f32 %v1457, %v1458
    %v1460 = vrot.slane %v1459, 2
    %v1461 = vadd.f32 %v1459, %v1460
    %v1462 = vrot.slane %v1461, 1
    %v1463 = vadd.f32 %v1461, %v1462
    %v1464 = vsel %vm683, %v163, 0.0
    %v1465 = vsel %vm683, %v168, 0.0
    %v1466 = vadd.f32 %v1464, %v1465
    %v1467 = vsel %vm683, %v173, 0.0
    %v1468 = vadd.f32 %v1466, %v1467
    %v1469 = vsel %vm683, %v178, 0.0
    %v1470 = vadd.f32 %v1468, %v1469
    %v1471 = vrot.slane %v1470, 4
    %v1472 = vadd.f32 %v1470, %v1471
    %v1473 = vrot.slane %v1472, 2
    %v1474 = vadd.f32 %v1472, %v1473
    %v1475 = vrot.slane %v1474, 1
    %v1476 = vadd.f32 %v1474, %v1475
    %v1477 = vsel %vm683, %v483, 0.0
    %v1478 = vsel %vm683, %v488, 0.0
    %v1479 = vadd.f32 %v1477, %v1478
    %v1480 = vsel %vm683, %v493, 0.0
    %v1481 = vadd.f32 %v1479, %v1480
    %v1482 = vsel %vm683, %v498, 0.0
    %v1483 = vadd.f32 %v1481, %v1482
    %v1484 = vrot.slane %v1483, 4
    %v1485 = vadd.f32 %v1483, %v1484
    %v1486 = vrot.slane %v1485, 2
    %v1487 = vadd.f32 %v1485, %v1486
    %v1488 = vrot.slane %v1487, 1
    %v1489 = vadd.f32 %v1487, %v1488
    %v1490 = vsel %vm683, %v164, 0.0
    %v1491 = vsel %vm683, %v169, 0.0
    %v1492 = vadd.f32 %v1490, %v1491
    %v1493 = vsel %vm683, %v174, 0.0
    %v1494 = vadd.f32 %v1492, %v1493
    %v1495 = vsel %vm683, %v179, 0.0
    %v1496 = vadd.f32 %v1494, %v1495
    %v1497 = vrot.slane %v1496, 4
    %v1498 = vadd.f32 %v1496, %v1497
    %v1499 = vrot.slane %v1498, 2
    %v1500 = vadd.f32 %v1498, %v1499
    %v1501 = vrot.slane %v1500, 1
    %v1502 = vadd.f32 %v1500, %v1501
    %v1503 = vsel %vm683, %v484, 0.0
    %v1504 = vsel %vm683, %v489, 0.0
    %v1505 = vadd.f32 %v1503, %v1504
    %v1506 = vsel %vm683, %v494, 0.0
    %v1507 = vadd.f32 %v1505, %v1506
    %v1508 = vsel %vm683, %v499, 0.0
    %v1509 = vadd.f32 %v1507, %v1508
    %v1510 = vrot.slane %v1509, 4
    %v1511 = vadd.f32 %v1509, %v1510
    %v1512 = vrot.slane %v1511, 2
    %v1513 = vadd.f32 %v1511, %v1512
    %v1514 = vrot.slane %v1513, 1
    %v1515 = vadd.f32 %v1513, %v1514
    %v1516 = vsel %vm683, %v165, 0.0
    %v1517 = vsel %vm683, %v170, 0.0
    %v1518 = vadd.f32 %v1516, %v1517
    %v1519 = vsel %vm683, %v175, 0.0
    %v1520 = vadd.f32 %v1518, %v1519
    %v1521 = vsel %vm683, %v180, 0.0
    %v1522 = vadd.f32 %v1520, %v1521
    %v1523 = vrot.slane %v1522, 4
    %v1524 = vadd.f32 %v1522, %v1523
    %v1525 = vrot.slane %v1524, 2
    %v1526 = vadd.f32 %v1524, %v1525
    %v1527 = vrot.slane %v1526, 1
    %v1528 = vadd.f32 %v1526, %v1527
    %v1529 = vsel %vm683, %v485, 0.0
    %v1530 = vsel %vm683, %v490, 0.0
    %v1531 = vadd.f32 %v1529, %v1530
    %v1532 = vsel %vm683, %v495, 0.0
    %v1533 = vadd.f32 %v1531, %v1532
    %v1534 = vsel %vm683, %v500, 0.0
    %v1535 = vadd.f32 %v1533, %v1534
    %v1536 = vrot.slane %v1535, 4
    %v1537 = vadd.f32 %v1535, %v1536
    %v1538 = vrot.slane %v1537, 2
    %v1539 = vadd.f32 %v1537, %v1538
    %v1540 = vrot.slane %v1539, 1
    %v1541 = vadd.f32 %v1539, %v1540
    %v1542 = vsel %vm683, %v166, 0.0
    %v1543 = vsel %vm683, %v171, 0.0
    %v1544 = vadd.f32 %v1542, %v1543
    %v1545 = vsel %vm683, %v176, 0.0
    %v1546 = vadd.f32 %v1544, %v1545
    %v1547 = vsel %vm683, %v181, 0.0
    %v1548 = vadd.f32 %v1546, %v1547
    %v1549 = vrot.slane %v1548, 4
    %v1550 = vadd.f32 %v1548, %v1549
    %v1551 = vrot.slane %v1550, 2
    %v1552 = vadd.f32 %v1550, %v1551
    %v1553 = vrot.slane %v1552, 1
    %v1554 = vadd.f32 %v1552, %v1553
    %v1555 = vsel %vm683, %v486, 0.0
    %v1556 = vsel %vm683, %v491, 0.0
    %v1557 = vadd.f32 %v1555, %v1556
    %v1558 = vsel %vm683, %v496, 0.0
    %v1559 = vadd.f32 %v1557, %v1558
    %v1560 = vsel %vm683, %v501, 0.0
    %v1561 = vadd.f32 %v1559, %v1560
    %v1562 = vrot.slane %v1561, 4
    %v1563 = vadd.f32 %v1561, %v1562
    %v1564 = vrot.slane %v1563, 2
    %v1565 = vadd.f32 %v1563, %v1564
    %v1566 = vrot.slane %v1565, 1
    %v1567 = vadd.f32 %v1565, %v1566
    %v1568 = vsel %vm683, %v167, 0.0
    %v1569 = vsel %vm683, %v172, 0.0
    %v1570 = vadd.f32 %v1568, %v1569
    %v1571 = vsel %vm683, %v177, 0.0
    %v1572 = vadd.f32 %v1570, %v1571
    %v1573 = vsel %vm683, %v182, 0.0
    %v1574 = vadd.f32 %v1572, %v1573
    %v1575 = vrot.slane %v1574, 4
    %v1576 = vadd.f32 %v1574, %v1575
    %v1577 = vrot.slane %v1576, 2
    %v1578 = vadd.f32 %v1576, %v1577
    %v1579 = vrot.slane %v1578, 1
    %v1580 = vadd.f32 %v1578, %v1579
    %v1581 = vsel %vm683, %v487, 0.0
    %v1582 = vsel %vm683, %v492, 0.0
    %v1583 = vadd.f32 %v1581, %v1582
    %v1584 = vsel %vm683, %v497, 0.0
    %v1585 = vadd.f32 %v1583, %v1584
    %v1586 = vsel %vm683, %v502, 0.0
    %v1587 = vadd.f32 %v1585, %v1586
    %v1588 = vrot.slane %v1587, 4
    %v1589 = vadd.f32 %v1587, %v1588
    %v1590 = vrot.slane %v1589, 2
    %v1591 = vadd.f32 %v1589, %v1590
    %v1592 = vrot.slane %v1591, 1
    %v1593 = vadd.f32 %v1591, %v1592
    %v1594 = vsel %vm683, %v183, 0.0
    %v1595 = vsel %vm683, %v188, 0.0
    %v1596 = vadd.f32 %v1594, %v1595
    %v1597 = vsel %vm683, %v193, 0.0
    %v1598 = vadd.f32 %v1596, %v1597
    %v1599 = vsel %vm683, %v198, 0.0
    %v1600 = vadd.f32 %v1598, %v1599
    %v1601 = vrot.slane %v1600, 4
    %v1602 = vadd.f32 %v1600, %v1601
    %v1603 = vrot.slane %v1602, 2
    %v1604 = vadd.f32 %v1602, %v1603
    %v1605 = vrot.slane %v1604, 1
    %v1606 = vadd.f32 %v1604, %v1605
    %v1607 = vsel %vm683, %v503, 0.0
    %v1608 = vsel %vm683, %v508, 0.0
    %v1609 = vadd.f32 %v1607, %v1608
    %v1610 = vsel %vm683, %v513, 0.0
    %v1611 = vadd.f32 %v1609, %v1610
    %v1612 = vsel %vm683, %v518, 0.0
    %v1613 = vadd.f32 %v1611, %v1612
    %v1614 = vrot.slane %v1613, 4
    %v1615 = vadd.f32 %v1613, %v1614
    %v1616 = vrot.slane %v1615, 2
    %v1617 = vadd.f32 %v1615, %v1616
    %v1618 = vrot.slane %v1617, 1
    %v1619 = vadd.f32 %v1617, %v1618
    %v1620 = vsel %vm683, %v184, 0.0
    %v1621 = vsel %vm683, %v189, 0.0
    %v1622 = vadd.f32 %v1620, %v1621
    %v1623 = vsel %vm683, %v194, 0.0
    %v1624 = vadd.f32 %v1622, %v1623
    %v1625 = vsel %vm683, %v199, 0.0
    %v1626 = vadd.f32 %v1624, %v1625
    %v1627 = vrot.slane %v1626, 4
    %v1628 = vadd.f32 %v1626, %v1627
    %v1629 = vrot.slane %v1628, 2
    %v1630 = vadd.f32 %v1628, %v1629
    %v1631 = vrot.slane %v1630, 1
    %v1632 = vadd.f32 %v1630, %v1631
    %v1633 = vsel %vm683, %v504, 0.0
    %v1634 = vsel %vm683, %v509, 0.0
    %v1635 = vadd.f32 %v1633, %v1634
    %v1636 = vsel %vm683, %v514, 0.0
    %v1637 = vadd.f32 %v1635, %v1636
    %v1638 = vsel %vm683, %v519, 0.0
    %v1639 = vadd.f32 %v1637, %v1638
    %v1640 = vrot.slane %v1639, 4
    %v1641 = vadd.f32 %v1639, %v1640
    %v1642 = vrot.slane %v1641, 2
    %v1643 = vadd.f32 %v1641, %v1642
    %v1644 = vrot.slane %v1643, 1
    %v1645 = vadd.f32 %v1643, %v1644
    %v1646 = vsel %vm683, %v185, 0.0
    %v1647 = vsel %vm683, %v190, 0.0
    %v1648 = vadd.f32 %v1646, %v1647
    %v1649 = vsel %vm683, %v195, 0.0
    %v1650 = vadd.f32 %v1648, %v1649
    %v1651 = vsel %vm683, %v200, 0.0
    %v1652 = vadd.f32 %v1650, %v1651
    %v1653 = vrot.slane %v1652, 4
    %v1654 = vadd.f32 %v1652, %v1653
    %v1655 = vrot.slane %v1654, 2
    %v1656 = vadd.f32 %v1654, %v1655
    %v1657 = vrot.slane %v1656, 1
    %v1658 = vadd.f32 %v1656, %v1657
    %v1659 = vsel %vm683, %v505, 0.0
    %v1660 = vsel %vm683, %v510, 0.0
    %v1661 = vadd.f32 %v1659, %v1660
    %v1662 = vsel %vm683, %v515, 0.0
    %v1663 = vadd.f32 %v1661, %v1662
    %v1664 = vsel %vm683, %v520, 0.0
    %v1665 = vadd.f32 %v1663, %v1664
    %v1666 = vrot.slane %v1665, 4
    %v1667 = vadd.f32 %v1665, %v1666
    %v1668 = vrot.slane %v1667, 2
    %v1669 = vadd.f32 %v1667, %v1668
    %v1670 = vrot.slane %v1669, 1
    %v1671 = vadd.f32 %v1669, %v1670
    %v1672 = vsel %vm683, %v186, 0.0
    %v1673 = vsel %vm683, %v191, 0.0
    %v1674 = vadd.f32 %v1672, %v1673
    %v1675 = vsel %vm683, %v196, 0.0
    %v1676 = vadd.f32 %v1674, %v1675
    %v1677 = vsel %vm683, %v201, 0.0
    %v1678 = vadd.f32 %v1676, %v1677
    %v1679 = vrot.slane %v1678, 4
    %v1680 = vadd.f32 %v1678, %v1679
    %v1681 = vrot.slane %v1680, 2
    %v1682 = vadd.f32 %v1680, %v1681
    %v1683 = vrot.slane %v1682, 1
    %v1684 = vadd.f32 %v1682, %v1683
    %v1685 = vsel %vm683, %v506, 0.0
    %v1686 = vsel %vm683, %v511, 0.0
    %v1687 = vadd.f32 %v1685, %v1686
    %v1688 = vsel %vm683, %v516, 0.0
    %v1689 = vadd.f32 %v1687, %v1688
    %v1690 = vsel %vm683, %v521, 0.0
    %v1691 = vadd.f32 %v1689, %v1690
    %v1692 = vrot.slane %v1691, 4
    %v1693 = vadd.f32 %v1691, %v1692
    %v1694 = vrot.slane %v1693, 2
    %v1695 = vadd.f32 %v1693, %v1694
    %v1696 = vrot.slane %v1695, 1
    %v1697 = vadd.f32 %v1695, %v1696
    %v1698 = vsel %vm683, %v187, 0.0
    %v1699 = vsel %vm683, %v192, 0.0
    %v1700 = vadd.f32 %v1698, %v1699
    %v1701 = vsel %vm683, %v197, 0.0
    %v1702 = vadd.f32 %v1700, %v1701
    %v1703 = vsel %vm683, %v202, 0.0
    %v1704 = vadd.f32 %v1702, %v1703
    %v1705 = vrot.slane %v1704, 4
    %v1706 = vadd.f32 %v1704, %v1705
    %v1707 = vrot.slane %v1706, 2
    %v1708 = vadd.f32 %v1706, %v1707
    %v1709 = vrot.slane %v1708, 1
    %v1710 = vadd.f32 %v1708, %v1709
    %v1711 = vsel %vm683, %v507, 0.0
    %v1712 = vsel %vm683, %v512, 0.0
    %v1713 = vadd.f32 %v1711, %v1712
    %v1714 = vsel %vm683, %v517, 0.0
    %v1715 = vadd.f32 %v1713, %v1714
    %v1716 = vsel %vm683, %v522, 0.0
    %v1717 = vadd.f32 %v1715, %v1716
    %v1718 = vrot.slane %v1717, 4
    %v1719 = vadd.f32 %v1717, %v1718
    %v1720 = vrot.slane %v1719, 2
    %v1721 = vadd.f32 %v1719, %v1720
    %v1722 = vrot.slane %v1721, 1
    %v1723 = vadd.f32 %v1721, %v1722
    %v1724 = vld [vmem:[#allocation5] sm:$0xff]
    %v1725 = vld [vmem:[#allocation5 + $0x8] sm:$0xff]
    %v1726 = vld [vmem:[#allocation5 + $0x10] sm:$0xff]
    %v1727 = vld [vmem:[#allocation5 + $0x18] sm:$0xff]
    %v1728 = vld [vmem:[#allocation5 + $0x20] sm:$0xff]
    %v1729 = vld [vmem:[#allocation5 + $0x28] sm:$0xff]
    %v1730 = vld [vmem:[#allocation5 + $0x30] sm:$0xff]
    %v1731 = vld [vmem:[#allocation5 + $0x38] sm:$0xff]
    %v1732 = vld [vmem:[#allocation5 + $0x40] sm:$0xff]
    %v1733 = vld [vmem:[#allocation5 + $0x48] sm:$0xff]
    %v1734 = vld [vmem:[#allocation5 + $0x50] sm:$0xff]
    %v1735 = vld [vmem:[#allocation5 + $0x58] sm:$0xff]
    %v1736 = vld [vmem:[#allocation5 + $0x60] sm:$0xff]
    %v1737 = vld [vmem:[#allocation5 + $0x68] sm:$0xff]
    %v1738 = vld [vmem:[#allocation5 + $0x70] sm:$0xff]
    %v1739 = vld [vmem:[#allocation5 + $0x78] sm:$0xff]
    %v1740 = vld [vmem:[#allocation5 + $0x80] sm:$0xff]
    %v1741 = vld [vmem:[#allocation5 + $0x88] sm:$0xff]
    %v1742 = vld [vmem:[#allocation5 + $0x90] sm:$0xff]
    %v1743 = vld [vmem:[#allocation5 + $0x98] sm:$0xff]
    %v1744 = vld [vmem:[#allocation5 + $0xa0] sm:$0xff]
    %v1745 = vld [vmem:[#allocation5 + $0xa8] sm:$0xff]
    %v1746 = vld [vmem:[#allocation5 + $0xb0] sm:$0xff]
    %v1747 = vld [vmem:[#allocation5 + $0xb8] sm:$0xff]
    %v1748 = vld [vmem:[#allocation5 + $0xc0] sm:$0xff]
    %v1749 = vld [vmem:[#allocation5 + $0xc8] sm:$0xff]
    %v1750 = vld [vmem:[#allocation5 + $0xd0] sm:$0xff]
    %v1751 = vld [vmem:[#allocation5 + $0xd8] sm:$0xff]
    %v1752 = vld [vmem:[#allocation5 + $0xe0] sm:$0xff]
    %v1753 = vld [vmem:[#allocation5 + $0xe8] sm:$0xff]
    %v1754 = vld [vmem:[#allocation5 + $0xf0] sm:$0xff]
    %v1755 = vld [vmem:[#allocation5 + $0xf8] sm:$0xff]
    %v1756 = vld [vmem:[#allocation5 + $0x100] sm:$0xff]
    %v1757 = vld [vmem:[#allocation5 + $0x108] sm:$0xff]
    %v1758 = vld [vmem:[#allocation5 + $0x110] sm:$0xff]
    %v1759 = vld [vmem:[#allocation5 + $0x118] sm:$0xff]
    %v1760 = vld [vmem:[#allocation5 + $0x120] sm:$0xff]
    %v1761 = vld [vmem:[#allocation5 + $0x128] sm:$0xff]
    %v1762 = vld [vmem:[#allocation5 + $0x130] sm:$0xff]
    %v1763 = vld [vmem:[#allocation5 + $0x138] sm:$0xff]
    %v1764 = vld [vmem:[#allocation5 + $0x140] sm:$0xff]
    %v1765 = vld [vmem:[#allocation5 + $0x148] sm:$0xff]
    %v1766 = vld [vmem:[#allocation5 + $0x150] sm:$0xff]
    %v1767 = vld [vmem:[#allocation5 + $0x158] sm:$0xff]
    %v1768 = vld [vmem:[#allocation5 + $0x160] sm:$0xff]
    %v1769 = vld [vmem:[#allocation5 + $0x168] sm:$0xff]
    %v1770 = vld [vmem:[#allocation5 + $0x170] sm:$0xff]
    %v1771 = vld [vmem:[#allocation5 + $0x178] sm:$0xff]
    %v1772 = vld [vmem:[#allocation5 + $0x180] sm:$0xff]
    %v1773 = vld [vmem:[#allocation5 + $0x188] sm:$0xff]
    %v1774 = vld [vmem:[#allocation5 + $0x190] sm:$0xff]
    %v1775 = vld [vmem:[#allocation5 + $0x198] sm:$0xff]
    %v1776 = vld [vmem:[#allocation5 + $0x1a0] sm:$0xff]
    %v1777 = vld [vmem:[#allocation5 + $0x1a8] sm:$0xff]
    %v1778 = vld [vmem:[#allocation5 + $0x1b0] sm:$0xff]
    %v1779 = vld [vmem:[#allocation5 + $0x1b8] sm:$0xff]
    %v1780 = vld [vmem:[#allocation5 + $0x1c0] sm:$0xff]
    %v1781 = vld [vmem:[#allocation5 + $0x1c8] sm:$0xff]
    %v1782 = vld [vmem:[#allocation5 + $0x1d0] sm:$0xff]
    %v1783 = vld [vmem:[#allocation5 + $0x1d8] sm:$0xff]
    %v1784 = vld [vmem:[#allocation5 + $0x1e0] sm:$0xff]
    %v1785 = vld [vmem:[#allocation5 + $0x1e8] sm:$0xff]
    %v1786 = vld [vmem:[#allocation5 + $0x1f0] sm:$0xff]
    %v1787 = vld [vmem:[#allocation5 + $0x1f8] sm:$0xff]
    %v1788 = vld [vmem:[#allocation5 + $0x200] sm:$0xff]
    %v1789 = vld [vmem:[#allocation5 + $0x208] sm:$0xff]
    %v1790 = vld [vmem:[#allocation5 + $0x210] sm:$0xff]
    %v1791 = vld [vmem:[#allocation5 + $0x218] sm:$0xff]
    %v1792 = vld [vmem:[#allocation5 + $0x220] sm:$0xff]
    %v1793 = vld [vmem:[#allocation5 + $0x228] sm:$0xff]
    %v1794 = vld [vmem:[#allocation5 + $0x230] sm:$0xff]
    %v1795 = vld [vmem:[#allocation5 + $0x238] sm:$0xff]
    %v1796 = vld [vmem:[#allocation5 + $0x240] sm:$0xff]
    %v1797 = vld [vmem:[#allocation5 + $0x248] sm:$0xff]
    %v1798 = vld [vmem:[#allocation5 + $0x250] sm:$0xff]
    %v1799 = vld [vmem:[#allocation5 + $0x258] sm:$0xff]
    %v1800 = vld [vmem:[#allocation5 + $0x260] sm:$0xff]
    %v1801 = vld [vmem:[#allocation5 + $0x268] sm:$0xff]
    %v1802 = vld [vmem:[#allocation5 + $0x270] sm:$0xff]
    %v1803 = vld [vmem:[#allocation5 + $0x278] sm:$0xff]
    %v1804 = vld [vmem:[#allocation5 + $0x280] sm:$0xff]
    %v1805 = vld [vmem:[#allocation5 + $0x288] sm:$0xff]
    %v1806 = vld [vmem:[#allocation5 + $0x290] sm:$0xff]
    %v1807 = vld [vmem:[#allocation5 + $0x298] sm:$0xff]
    %v1808 = vld [vmem:[#allocation5 + $0x2a0] sm:$0xff]
    %v1809 = vld [vmem:[#allocation5 + $0x2a8] sm:$0xff]
    %v1810 = vld [vmem:[#allocation5 + $0x2b0] sm:$0xff]
    %v1811 = vld [vmem:[#allocation5 + $0x2b8] sm:$0xff]
    %v1812 = vld [vmem:[#allocation5 + $0x2c0] sm:$0xff]
    %v1813 = vld [vmem:[#allocation5 + $0x2c8] sm:$0xff]
    %v1814 = vld [vmem:[#allocation5 + $0x2d0] sm:$0xff]
    %v1815 = vld [vmem:[#allocation5 + $0x2d8] sm:$0xff]
    %v1816 = vld [vmem:[#allocation5 + $0x2e0] sm:$0xff]
    %v1817 = vld [vmem:[#allocation5 + $0x2e8] sm:$0xff]
    %v1818 = vld [vmem:[#allocation5 + $0x2f0] sm:$0xff]
    %v1819 = vld [vmem:[#allocation5 + $0x2f8] sm:$0xff]
    %v1820 = vld [vmem:[#allocation5 + $0x300] sm:$0xff]
    %v1821 = vld [vmem:[#allocation5 + $0x308] sm:$0xff]
    %v1822 = vld [vmem:[#allocation5 + $0x310] sm:$0xff]
    %v1823 = vld [vmem:[#allocation5 + $0x318] sm:$0xff]
    %v1824 = vld [vmem:[#allocation5 + $0x320] sm:$0xff]
    %v1825 = vld [vmem:[#allocation5 + $0x328] sm:$0xff]
    %v1826 = vld [vmem:[#allocation5 + $0x330] sm:$0xff]
    %v1827 = vld [vmem:[#allocation5 + $0x338] sm:$0xff]
    %v1828 = vld [vmem:[#allocation5 + $0x340] sm:$0xff]
    %v1829 = vld [vmem:[#allocation5 + $0x348] sm:$0xff]
    %v1830 = vld [vmem:[#allocation5 + $0x350] sm:$0xff]
    %v1831 = vld [vmem:[#allocation5 + $0x358] sm:$0xff]
    %v1832 = vld [vmem:[#allocation5 + $0x360] sm:$0xff]
    %v1833 = vld [vmem:[#allocation5 + $0x368] sm:$0xff]
    %v1834 = vld [vmem:[#allocation5 + $0x370] sm:$0xff]
    %v1835 = vld [vmem:[#allocation5 + $0x378] sm:$0xff]
    %v1836 = vld [vmem:[#allocation5 + $0x380] sm:$0xff]
    %v1837 = vld [vmem:[#allocation5 + $0x388] sm:$0xff]
    %v1838 = vld [vmem:[#allocation5 + $0x390] sm:$0xff]
    %v1839 = vld [vmem:[#allocation5 + $0x398] sm:$0xff]
    %v1840 = vld [vmem:[#allocation5 + $0x3a0] sm:$0xff]
    %v1841 = vld [vmem:[#allocation5 + $0x3a8] sm:$0xff]
    %v1842 = vld [vmem:[#allocation5 + $0x3b0] sm:$0xff]
    %v1843 = vld [vmem:[#allocation5 + $0x3b8] sm:$0xff]
    %v1844 = vld [vmem:[#allocation5 + $0x3c0] sm:$0xff]
    %v1845 = vld [vmem:[#allocation5 + $0x3c8] sm:$0xff]
    %v1846 = vld [vmem:[#allocation5 + $0x3d0] sm:$0xff]
    %v1847 = vld [vmem:[#allocation5 + $0x3d8] sm:$0xff]
    %v1848 = vld [vmem:[#allocation5 + $0x3e0] sm:$0xff]
    %v1849 = vld [vmem:[#allocation5 + $0x3e8] sm:$0xff]
    %v1850 = vld [vmem:[#allocation5 + $0x3f0] sm:$0xff]
    %v1851 = vld [vmem:[#allocation5 + $0x3f8] sm:$0xff]
    %v1852 = vld [vmem:[#allocation5 + $0x400] sm:$0xff]
    %v1853 = vld [vmem:[#allocation5 + $0x408] sm:$0xff]
    %v1854 = vld [vmem:[#allocation5 + $0x410] sm:$0xff]
    %v1855 = vld [vmem:[#allocation5 + $0x418] sm:$0xff]
    %v1856 = vld [vmem:[#allocation5 + $0x420] sm:$0xff]
    %v1857 = vld [vmem:[#allocation5 + $0x428] sm:$0xff]
    %v1858 = vld [vmem:[#allocation5 + $0x430] sm:$0xff]
    %v1859 = vld [vmem:[#allocation5 + $0x438] sm:$0xff]
    %v1860 = vld [vmem:[#allocation5 + $0x440] sm:$0xff]
    %v1861 = vld [vmem:[#allocation5 + $0x448] sm:$0xff]
    %v1862 = vld [vmem:[#allocation5 + $0x450] sm:$0xff]
    %v1863 = vld [vmem:[#allocation5 + $0x458] sm:$0xff]
    %v1864 = vld [vmem:[#allocation5 + $0x460] sm:$0xff]
    %v1865 = vld [vmem:[#allocation5 + $0x468] sm:$0xff]
    %v1866 = vld [vmem:[#allocation5 + $0x470] sm:$0xff]
    %v1867 = vld [vmem:[#allocation5 + $0x478] sm:$0xff]
    %v1868 = vld [vmem:[#allocation5 + $0x480] sm:$0xff]
    %v1869 = vld [vmem:[#allocation5 + $0x488] sm:$0xff]
    %v1870 = vld [vmem:[#allocation5 + $0x490] sm:$0xff]
    %v1871 = vld [vmem:[#allocation5 + $0x498] sm:$0xff]
    %v1872 = vld [vmem:[#allocation5 + $0x4a0] sm:$0xff]
    %v1873 = vld [vmem:[#allocation5 + $0x4a8] sm:$0xff]
    %v1874 = vld [vmem:[#allocation5 + $0x4b0] sm:$0xff]
    %v1875 = vld [vmem:[#allocation5 + $0x4b8] sm:$0xff]
    %v1876 = vld [vmem:[#allocation5 + $0x4c0] sm:$0xff]
    %v1877 = vld [vmem:[#allocation5 + $0x4c8] sm:$0xff]
    %v1878 = vld [vmem:[#allocation5 + $0x4d0] sm:$0xff]
    %v1879 = vld [vmem:[#allocation5 + $0x4d8] sm:$0xff]
    %v1880 = vld [vmem:[#allocation5 + $0x4e0] sm:$0xff]
    %v1881 = vld [vmem:[#allocation5 + $0x4e8] sm:$0xff]
    %v1882 = vld [vmem:[#allocation5 + $0x4f0] sm:$0xff]
    %v1883 = vld [vmem:[#allocation5 + $0x4f8] sm:$0xff]
    %v1884 = vld [vmem:[%s2] sm:$0x1]
    %v1886 = vlaneseq
    %v1887 = vshrl.u32 %v1886, 7
    %v1888 = vsub.s32 0, %v1887
    %v1889 = vrot.slane %v1884, %v1888
    %vm1971 = vcmask 1041409
    %v1972 = vsel %vm1971, %v826, %v696
    %vm1973 = vcmask 1042434
    %v1974 = vsel %vm1973, %v956, %v1972
    %vm1975 = vcmask 1043459
    %v1976 = vsel %vm1975, %v1086, %v1974
    %vm1977 = vcmask 1044484
    %v1978 = vsel %vm1977, %v1216, %v1976
    %vm1979 = vcmask 1045509
    %v1980 = vsel %vm1979, %v1346, %v1978
    %vm1981 = vcmask 1046534
    %v1982 = vsel %vm1981, %v1476, %v1980
    %vm1983 = vcmask 1047559
    %v1984 = vsel %vm1983, %v1606, %v1982
    %v1985 = vsel %vm1971, %v839, %v709
    %v1986 = vsel %vm1973, %v969, %v1985
    %v1987 = vsel %vm1975, %v1099, %v1986
    %v1988 = vsel %vm1977, %v1229, %v1987
    %v1989 = vsel %vm1979, %v1359, %v1988
    %v1990 = vsel %vm1981, %v1489, %v1989
    %v1991 = vsel %vm1983, %v1619, %v1990
    %v1992 = vsel %vm1971, %v852, %v722
    %v1993 = vsel %vm1973, %v982, %v1992
    %v1994 = vsel %vm1975, %v1112, %v1993
    %v1995 = vsel %vm1977, %v1242, %v1994
    %v1996 = vsel %vm1979, %v1372, %v1995
    %v1997 = vsel %vm1981, %v1502, %v1996
    %v1998 = vsel %vm1983, %v1632, %v1997
    %v1999 = vsel %vm1971, %v865, %v735
    %v2000 = vsel %vm1973, %v995, %v1999
    %v2001 = vsel %vm1975, %v1125, %v2000
    %v2002 = vsel %vm1977, %v1255, %v2001
    %v2003 = vsel %vm1979, %v1385, %v2002
    %v2004 = vsel %vm1981, %v1515, %v2003
    %v2005 = vsel %vm1983, %v1645, %v2004
    %v2006 = vsel %vm1971, %v878, %v748
    %v2007 = vsel %vm1973, %v1008, %v2006
    %v2008 = vsel %vm1975, %v1138, %v2007
    %v2009 = vsel %vm1977, %v1268, %v2008
    %v2010 = vsel %vm1979, %v1398, %v2009
    %v2011 = vsel %vm1981, %v1528, %v2010
    %v2012 = vsel %vm1983, %v1658, %v2011
    %v2013 = vsel %vm1971, %v891, %v761
    %v2014 = vsel %vm1973, %v1021, %v2013
    %v2015 = vsel %vm1975, %v1151, %v2014
    %v2016 = vsel %vm1977, %v1281, %v2015
    %v2017 = vsel %vm1979, %v1411, %v2016
    %v2018 = vsel %vm1981, %v1541, %v2017
    %v2019 = vsel %vm1983, %v1671, %v2018
    %v2020 = vsel %vm1971, %v904, %v774
    %v2021 = vsel %vm1973, %v1034, %v2020
    %v2022 = vsel %vm1975, %v1164, %v2021
    %v2023 = vsel %vm1977, %v1294, %v2022
    %v2024 = vsel %vm1979, %v1424, %v2023
    %v2025 = vsel %vm1981, %v1554, %v2024
    %v2026 = vsel %vm1983, %v1684, %v2025
    %v2027 = vsel %vm1971, %v917, %v787
    %v2028 = vsel %vm1973, %v1047, %v2027
    %v2029 = vsel %vm1975, %v1177, %v2028
    %v2030 = vsel %vm1977, %v1307, %v2029
    %v2031 = vsel %vm1979, %v1437, %v2030
    %v2032 = vsel %vm1981, %v1567, %v2031
    %v2033 = vsel %vm1983, %v1697, %v2032
    %v2034 = vsel %vm1971, %v930, %v800
    %v2035 = vsel %vm1973, %v1060, %v2034
    %v2036 = vsel %vm1975, %v1190, %v2035
    %v2037 = vsel %vm1977, %v1320, %v2036
    %v2038 = vsel %vm1979, %v1450, %v2037
    %v2039 = vsel %vm1981, %v1580, %v2038
    %v2040 = vsel %vm1983, %v1710, %v2039
    %v2041 = vsel %vm1971, %v943, %v813
    %v2042 = vsel %vm1973, %v1073, %v2041
    %v2043 = vsel %vm1975, %v1203, %v2042
    %v2044 = vsel %vm1977, %v1333, %v2043
    %v2045 = vsel %vm1979, %v1463, %v2044
    %v2046 = vsel %vm1981, %v1593, %v2045
    %v2047 = vsel %vm1983, %v1723, %v2046
    %2058 = vmatprep.subr.mxu0 0.0
    %2059 = vmatpush1.msra.mxu0 %v1724
    %2060 = vmatprep.subr.mxu0 0.0
    %2061 = vmatpush1.msra.mxu0 %v1725
    %2062 = vmatprep.subr.mxu0 0.0
    %2063 = vmatpush1.msra.mxu0 %v1726
    %2064 = vmatprep.subr.mxu0 0.0
    %2065 = vmatpush1.msra.mxu0 %v1727
    %2066 = vmatprep.subr.mxu0 0.0
    %2067 = vmatpush1.msra.mxu0 %v1728
    %2068 = vmatprep.subr.mxu0 0.0
    %2069 = vmatpush1.msra.mxu0 %v1729
    %2070 = vmatprep.subr.mxu0 0.0
    %2071 = vmatpush1.msra.mxu0 %v1730
    %2072 = vmatprep.subr.mxu0 0.0
    %2073 = vmatpush1.msra.mxu0 %v1731
    %2074 = vmatprep.subr.mxu0 0.0
    %2075 = vmatpush1.msra.mxu0 %v1732
    %2076 = vmatprep.subr.mxu0 0.0
    %2077 = vmatpush1.msra.mxu0 %v1733
    %2078 = vmatprep.subr.mxu0 0.0
    %2079 = vmatpush1.msra.mxu0 %v1734
    %2080 = vmatprep.subr.mxu0 0.0
    %2081 = vmatpush1.msra.mxu0 %v1735
    %2082 = vmatprep.subr.mxu0 0.0
    %2083 = vmatpush1.msra.mxu0 %v1736
    %2084 = vmatprep.subr.mxu0 0.0
    %2085 = vmatpush1.msra.mxu0 %v1737
    %2086 = vmatprep.subr.mxu0 0.0
    %2087 = vmatpush1.msra.mxu0 %v1738
    %2088 = vmatprep.subr.mxu0 0.0
    %2089 = vmatpush1.msra.mxu0 %v1739
    %2090 = vmatprep.subr.mxu0 0.0
    %2091 = vmatpush1.msra.mxu0 %v1740
    %2092 = vmatprep.subr.mxu0 0.0
    %2093 = vmatpush1.msra.mxu0 %v1741
    %2094 = vmatprep.subr.mxu0 0.0
    %2095 = vmatpush1.msra.mxu0 %v1742
    %2096 = vmatprep.subr.mxu0 0.0
    %2097 = vmatpush1.msra.mxu0 %v1743
    %2098 = vmatprep.subr.mxu0 0.0
    %2099 = vmatpush1.msra.mxu0 %v1744
    %2100 = vmatprep.subr.mxu0 0.0
    %2101 = vmatpush1.msra.mxu0 %v1745
    %2102 = vmatprep.subr.mxu0 0.0
    %2103 = vmatpush1.msra.mxu0 %v1746
    %2104 = vmatprep.subr.mxu0 0.0
    %2105 = vmatpush1.msra.mxu0 %v1747
    %2106 = vmatprep.subr.mxu0 0.0
    %2107 = vmatpush1.msra.mxu0 %v1748
    %2108 = vmatprep.subr.mxu0 0.0
    %2109 = vmatpush1.msra.mxu0 %v1749
    %2110 = vmatprep.subr.mxu0 0.0
    %2111 = vmatpush1.msra.mxu0 %v1750
    %2112 = vmatprep.subr.mxu0 0.0
    %2113 = vmatpush1.msra.mxu0 %v1751
    %2114 = vmatprep.subr.mxu0 0.0
    %2115 = vmatpush1.msra.mxu0 %v1752
    %2116 = vmatprep.subr.mxu0 0.0
    %2117 = vmatpush1.msra.mxu0 %v1753
    %2118 = vmatprep.subr.mxu0 0.0
    %2119 = vmatpush1.msra.mxu0 %v1754
    %2120 = vmatprep.subr.mxu0 0.0
    %2121 = vmatpush1.msra.mxu0 %v1755
    %2122 = vmatprep.mubr.f32.mxu0 %v1991
    %2123 = vmatmul.mubr.f32.gmra.mrb[0].mxu0 %v1984
    %v2124 = vpop.f32.mrb[0].mxu0
    %v2125 = vadd.f32 %v1889, %v2124
    %v2126 = vpop.f32.mrb[0].mxu0
    %2127 = vdwg.mxu0
    %2128 = vmatprep.subr.mxu0 0.0
    %2129 = vmatpush1.msra.mxu0 %v1756
    %2130 = vmatprep.subr.mxu0 0.0
    %2131 = vmatpush1.msra.mxu0 %v1757
    %2132 = vmatprep.subr.mxu0 0.0
    %2133 = vmatpush1.msra.mxu0 %v1758
    %2134 = vmatprep.subr.mxu0 0.0
    %2135 = vmatpush1.msra.mxu0 %v1759
    %2136 = vmatprep.subr.mxu0 0.0
    %2137 = vmatpush1.msra.mxu0 %v1760
    %2138 = vmatprep.subr.mxu0 0.0
    %2139 = vmatpush1.msra.mxu0 %v1761
    %2140 = vmatprep.subr.mxu0 0.0
    %2141 = vmatpush1.msra.mxu0 %v1762
    %2142 = vmatprep.subr.mxu0 0.0
    %2143 = vmatpush1.msra.mxu0 %v1763
    %2144 = vmatprep.subr.mxu0 0.0
    %2145 = vmatpush1.msra.mxu0 %v1764
    %2146 = vmatprep.subr.mxu0 0.0
    %2147 = vmatpush1.msra.mxu0 %v1765
    %2148 = vmatprep.subr.mxu0 0.0
    %2149 = vmatpush1.msra.mxu0 %v1766
    %2150 = vmatprep.subr.mxu0 0.0
    %2151 = vmatpush1.msra.mxu0 %v1767
    %2152 = vmatprep.subr.mxu0 0.0
    %2153 = vmatpush1.msra.mxu0 %v1768
    %2154 = vmatprep.subr.mxu0 0.0
    %2155 = vmatpush1.msra.mxu0 %v1769
    %2156 = vmatprep.subr.mxu0 0.0
    %2157 = vmatpush1.msra.mxu0 %v1770
    %2158 = vmatprep.subr.mxu0 0.0
    %2159 = vmatpush1.msra.mxu0 %v1771
    %2160 = vmatprep.subr.mxu0 0.0
    %2161 = vmatpush1.msra.mxu0 %v1772
    %2162 = vmatprep.subr.mxu0 0.0
    %2163 = vmatpush1.msra.mxu0 %v1773
    %2164 = vmatprep.subr.mxu0 0.0
    %2165 = vmatpush1.msra.mxu0 %v1774
    %2166 = vmatprep.subr.mxu0 0.0
    %2167 = vmatpush1.msra.mxu0 %v1775
    %2168 = vmatprep.subr.mxu0 0.0
    %2169 = vmatpush1.msra.mxu0 %v1776
    %2170 = vmatprep.subr.mxu0 0.0
    %2171 = vmatpush1.msra.mxu0 %v1777
    %2172 = vmatprep.subr.mxu0 0.0
    %2173 = vmatpush1.msra.mxu0 %v1778
    %2174 = vmatprep.subr.mxu0 0.0
    %2175 = vmatpush1.msra.mxu0 %v1779
    %2176 = vmatprep.subr.mxu0 0.0
    %2177 = vmatpush1.msra.mxu0 %v1780
    %2178 = vmatprep.subr.mxu0 0.0
    %2179 = vmatpush1.msra.mxu0 %v1781
    %2180 = vmatprep.subr.mxu0 0.0
    %2181 = vmatpush1.msra.mxu0 %v1782
    %2182 = vmatprep.subr.mxu0 0.0
    %2183 = vmatpush1.msra.mxu0 %v1783
    %2184 = vmatprep.subr.mxu0 0.0
    %2185 = vmatpush1.msra.mxu0 %v1784
    %2186 = vmatprep.subr.mxu0 0.0
    %2187 = vmatpush1.msra.mxu0 %v1785
    %2188 = vmatprep.subr.mxu0 0.0
    %2189 = vmatpush1.msra.mxu0 %v1786
    %2190 = vmatprep.subr.mxu0 0.0
    %2191 = vmatpush1.msra.mxu0 %v1787
    %2192 = vmatprep.mubr.f32.mxu0 %v2005
    %2193 = vmatmul.mubr.f32.gmra.mrb[0].mxu0 %v1998
    %v2194 = vpop.f32.mrb[0].mxu0
    %v2195 = vadd.f32 %v2125, %v2194
    %v2196 = vpop.f32.mrb[0].mxu0
    %2197 = vdwg.mxu0
    %2198 = vmatprep.subr.mxu0 0.0
    %2199 = vmatpush1.msra.mxu0 %v1788
    %2200 = vmatprep.subr.mxu0 0.0
    %2201 = vmatpush1.msra.mxu0 %v1789
    %2202 = vmatprep.subr.mxu0 0.0
    %2203 = vmatpush1.msra.mxu0 %v1790
    %2204 = vmatprep.subr.mxu0 0.0
    %2205 = vmatpush1.msra.mxu0 %v1791
    %2206 = vmatprep.subr.mxu0 0.0
    %2207 = vmatpush1.msra.mxu0 %v1792
    %2208 = vmatprep.subr.mxu0 0.0
    %2209 = vmatpush1.msra.mxu0 %v1793
    %2210 = vmatprep.subr.mxu0 0.0
    %2211 = vmatpush1.msra.mxu0 %v1794
    %2212 = vmatprep.subr.mxu0 0.0
    %2213 = vmatpush1.msra.mxu0 %v1795
    %2214 = vmatprep.subr.mxu0 0.0
    %2215 = vmatpush1.msra.mxu0 %v1796
    %2216 = vmatprep.subr.mxu0 0.0
    %2217 = vmatpush1.msra.mxu0 %v1797
    %2218 = vmatprep.subr.mxu0 0.0
    %2219 = vmatpush1.msra.mxu0 %v1798
    %2220 = vmatprep.subr.mxu0 0.0
    %2221 = vmatpush1.msra.mxu0 %v1799
    %2222 = vmatprep.subr.mxu0 0.0
    %2223 = vmatpush1.msra.mxu0 %v1800
    %2224 = vmatprep.subr.mxu0 0.0
    %2225 = vmatpush1.msra.mxu0 %v1801
    %2226 = vmatprep.subr.mxu0 0.0
    %2227 = vmatpush1.msra.mxu0 %v1802
    %2228 = vmatprep.subr.mxu0 0.0
    %2229 = vmatpush1.msra.mxu0 %v1803
    %2230 = vmatprep.subr.mxu0 0.0
    %2231 = vmatpush1.msra.mxu0 %v1804
    %2232 = vmatprep.subr.mxu0 0.0
    %2233 = vmatpush1.msra.mxu0 %v1805
    %2234 = vmatprep.subr.mxu0 0.0
    %2235 = vmatpush1.msra.mxu0 %v1806
    %2236 = vmatprep.subr.mxu0 0.0
    %2237 = vmatpush1.msra.mxu0 %v1807
    %2238 = vmatprep.subr.mxu0 0.0
    %2239 = vmatpush1.msra.mxu0 %v1808
    %2240 = vmatprep.subr.mxu0 0.0
    %2241 = vmatpush1.msra.mxu0 %v1809
    %2242 = vmatprep.subr.mxu0 0.0
    %2243 = vmatpush1.msra.mxu0 %v1810
    %2244 = vmatprep.subr.mxu0 0.0
    %2245 = vmatpush1.msra.mxu0 %v1811
    %2246 = vmatprep.subr.mxu0 0.0
    %2247 = vmatpush1.msra.mxu0 %v1812
    %2248 = vmatprep.subr.mxu0 0.0
    %2249 = vmatpush1.msra.mxu0 %v1813
    %2250 = vmatprep.subr.mxu0 0.0
    %2251 = vmatpush1.msra.mxu0 %v1814
    %2252 = vmatprep.subr.mxu0 0.0
    %2253 = vmatpush1.msra.mxu0 %v1815
    %2254 = vmatprep.subr.mxu0 0.0
    %2255 = vmatpush1.msra.mxu0 %v1816
    %2256 = vmatprep.subr.mxu0 0.0
    %2257 = vmatpush1.msra.mxu0 %v1817
    %2258 = vmatprep.subr.mxu0 0.0
    %2259 = vmatpush1.msra.mxu0 %v1818
    %2260 = vmatprep.subr.mxu0 0.0
    %2261 = vmatpush1.msra.mxu0 %v1819
    %2262 = vmatprep.mubr.f32.mxu0 %v2019
    %2263 = vmatmul.mubr.f32.gmra.mrb[0].mxu0 %v2012
    %v2264 = vpop.f32.mrb[0].mxu0
    %v2265 = vadd.f32 %v2195, %v2264
    %v2266 = vpop.f32.mrb[0].mxu0
    %2267 = vdwg.mxu0
    %2268 = vmatprep.subr.mxu0 0.0
    %2269 = vmatpush1.msra.mxu0 %v1820
    %2270 = vmatprep.subr.mxu0 0.0
    %2271 = vmatpush1.msra.mxu0 %v1821
    %2272 = vmatprep.subr.mxu0 0.0
    %2273 = vmatpush1.msra.mxu0 %v1822
    %2274 = vmatprep.subr.mxu0 0.0
    %2275 = vmatpush1.msra.mxu0 %v1823
    %2276 = vmatprep.subr.mxu0 0.0
    %2277 = vmatpush1.msra.mxu0 %v1824
    %2278 = vmatprep.subr.mxu0 0.0
    %2279 = vmatpush1.msra.mxu0 %v1825
    %2280 = vmatprep.subr.mxu0 0.0
    %2281 = vmatpush1.msra.mxu0 %v1826
    %2282 = vmatprep.subr.mxu0 0.0
    %2283 = vmatpush1.msra.mxu0 %v1827
    %2284 = vmatprep.subr.mxu0 0.0
    %2285 = vmatpush1.msra.mxu0 %v1828
    %2286 = vmatprep.subr.mxu0 0.0
    %2287 = vmatpush1.msra.mxu0 %v1829
    %2288 = vmatprep.subr.mxu0 0.0
    %2289 = vmatpush1.msra.mxu0 %v1830
    %2290 = vmatprep.subr.mxu0 0.0
    %2291 = vmatpush1.msra.mxu0 %v1831
    %2292 = vmatprep.subr.mxu0 0.0
    %2293 = vmatpush1.msra.mxu0 %v1832
    %2294 = vmatprep.subr.mxu0 0.0
    %2295 = vmatpush1.msra.mxu0 %v1833
    %2296 = vmatprep.subr.mxu0 0.0
    %2297 = vmatpush1.msra.mxu0 %v1834
    %2298 = vmatprep.subr.mxu0 0.0
    %2299 = vmatpush1.msra.mxu0 %v1835
    %2300 = vmatprep.subr.mxu0 0.0
    %2301 = vmatpush1.msra.mxu0 %v1836
    %2302 = vmatprep.subr.mxu0 0.0
    %2303 = vmatpush1.msra.mxu0 %v1837
    %2304 = vmatprep.subr.mxu0 0.0
    %2305 = vmatpush1.msra.mxu0 %v1838
    %2306 = vmatprep.subr.mxu0 0.0
    %2307 = vmatpush1.msra.mxu0 %v1839
    %2308 = vmatprep.subr.mxu0 0.0
    %2309 = vmatpush1.msra.mxu0 %v1840
    %2310 = vmatprep.subr.mxu0 0.0
    %2311 = vmatpush1.msra.mxu0 %v1841
    %2312 = vmatprep.subr.mxu0 0.0
    %2313 = vmatpush1.msra.mxu0 %v1842
    %2314 = vmatprep.subr.mxu0 0.0
    %2315 = vmatpush1.msra.mxu0 %v1843
    %2316 = vmatprep.subr.mxu0 0.0
    %2317 = vmatpush1.msra.mxu0 %v1844
    %2318 = vmatprep.subr.mxu0 0.0
    %2319 = vmatpush1.msra.mxu0 %v1845
    %2320 = vmatprep.subr.mxu0 0.0
    %2321 = vmatpush1.msra.mxu0 %v1846
    %2322 = vmatprep.subr.mxu0 0.0
    %2323 = vmatpush1.msra.mxu0 %v1847
    %2324 = vmatprep.subr.mxu0 0.0
    %2325 = vmatpush1.msra.mxu0 %v1848
    %2326 = vmatprep.subr.mxu0 0.0
    %2327 = vmatpush1.msra.mxu0 %v1849
    %2328 = vmatprep.subr.mxu0 0.0
    %2329 = vmatpush1.msra.mxu0 %v1850
    %2330 = vmatprep.subr.mxu0 0.0
    %2331 = vmatpush1.msra.mxu0 %v1851
    %2332 = vmatprep.mubr.f32.mxu0 %v2033
    %2333 = vmatmul.mubr.f32.gmra.mrb[0].mxu0 %v2026
    %v2334 = vpop.f32.mrb[0].mxu0
    %v2335 = vadd.f32 %v2265, %v2334
    %v2336 = vpop.f32.mrb[0].mxu0
    %2337 = vdwg.mxu0
    %2338 = vmatprep.subr.mxu0 0.0
    %2339 = vmatpush1.msra.mxu0 %v1852
    %2340 = vmatprep.subr.mxu0 0.0
    %2341 = vmatpush1.msra.mxu0 %v1853
    %2342 = vmatprep.subr.mxu0 0.0
    %2343 = vmatpush1.msra.mxu0 %v1854
    %2344 = vmatprep.subr.mxu0 0.0
    %2345 = vmatpush1.msra.mxu0 %v1855
    %2346 = vmatprep.subr.mxu0 0.0
    %2347 = vmatpush1.msra.mxu0 %v1856
    %2348 = vmatprep.subr.mxu0 0.0
    %2349 = vmatpush1.msra.mxu0 %v1857
    %2350 = vmatprep.subr.mxu0 0.0
    %2351 = vmatpush1.msra.mxu0 %v1858
    %2352 = vmatprep.subr.mxu0 0.0
    %2353 = vmatpush1.msra.mxu0 %v1859
    %2354 = vmatprep.subr.mxu0 0.0
    %2355 = vmatpush1.msra.mxu0 %v1860
    %2356 = vmatprep.subr.mxu0 0.0
    %2357 = vmatpush1.msra.mxu0 %v1861
    %2358 = vmatprep.subr.mxu0 0.0
    %2359 = vmatpush1.msra.mxu0 %v1862
    %2360 = vmatprep.subr.mxu0 0.0
    %2361 = vmatpush1.msra.mxu0 %v1863
    %2362 = vmatprep.subr.mxu0 0.0
    %2363 = vmatpush1.msra.mxu0 %v1864
    %2364 = vmatprep.subr.mxu0 0.0
    %2365 = vmatpush1.msra.mxu0 %v1865
    %2366 = vmatprep.subr.mxu0 0.0
    %2367 = vmatpush1.msra.mxu0 %v1866
    %2368 = vmatprep.subr.mxu0 0.0
    %2369 = vmatpush1.msra.mxu0 %v1867
    %2370 = vmatprep.subr.mxu0 0.0
    %2371 = vmatpush1.msra.mxu0 %v1868
    %2372 = vmatprep.subr.mxu0 0.0
    %2373 = vmatpush1.msra.mxu0 %v1869
    %2374 = vmatprep.subr.mxu0 0.0
    %2375 = vmatpush1.msra.mxu0 %v1870
    %2376 = vmatprep.subr.mxu0 0.0
    %2377 = vmatpush1.msra.mxu0 %v1871
    %2378 = vmatprep.subr.mxu0 0.0
    %2379 = vmatpush1.msra.mxu0 %v1872
    %2380 = vmatprep.subr.mxu0 0.0
    %2381 = vmatpush1.msra.mxu0 %v1873
    %2382 = vmatprep.subr.mxu0 0.0
    %2383 = vmatpush1.msra.mxu0 %v1874
    %2384 = vmatprep.subr.mxu0 0.0
    %2385 = vmatpush1.msra.mxu0 %v1875
    %2386 = vmatprep.subr.mxu0 0.0
    %2387 = vmatpush1.msra.mxu0 %v1876
    %2388 = vmatprep.subr.mxu0 0.0
    %2389 = vmatpush1.msra.mxu0 %v1877
    %2390 = vmatprep.subr.mxu0 0.0
    %2391 = vmatpush1.msra.mxu0 %v1878
    %2392 = vmatprep.subr.mxu0 0.0
    %2393 = vmatpush1.msra.mxu0 %v1879
    %2394 = vmatprep.subr.mxu0 0.0
    %2395 = vmatpush1.msra.mxu0 %v1880
    %2396 = vmatprep.subr.mxu0 0.0
    %2397 = vmatpush1.msra.mxu0 %v1881
    %2398 = vmatprep.subr.mxu0 0.0
    %2399 = vmatpush1.msra.mxu0 %v1882
    %2400 = vmatprep.subr.mxu0 0.0
    %2401 = vmatpush1.msra.mxu0 %v1883
    %2402 = vmatprep.mubr.f32.mxu0 %v2047
    %2403 = vmatmul.mubr.f32.gmra.mrb[0].mxu0 %v2040
    %v2404 = vpop.f32.mrb[0].mxu0
    %v2405 = vadd.f32 %v2335, %v2404
    %v2406 = vpop.f32.mrb[0].mxu0
    %2407 = vdwg.mxu0
    %v2408 = vmax.f32 %v2405, 0.0
    %2409 = vst [vmem:[#allocation7] sm:$0xff] %v2408
    // Predicated region
    $region22: #{tpu_custom_call.1} parent=1 // pred_check
      _
    $region23: #{tpu_custom_call.1} parent=1 // pred_check_branch
      %2411 = sbr.rel (0) target = $region25
    $region24: #{tpu_custom_call.1} parent=1 // pred_region
      %s2413 = ssub.s32 128, 128
      %2414 = vsyncadd [#allocation4], %s2413
      %s2416 = sshll.u32 [#allocation7], 4
      %s2417 = int_to_ptr.vmem [resolvable:$true] %s2416
      %2419 = dma.vmem_to_hbm [thread:$0]  %s2417, 128, %s3, [#allocation4]
    $region25: #{tpu_custom_call.1} parent=1 // pred_fallthru
      _
    // Predicated region
    $region26: #{tpu_custom_call.1} parent=1 // pred_check
      _
    $region27: #{tpu_custom_call.1} parent=1 // pred_check_branch
      %2421 = sbr.rel (0) target = $region29
    $region28: #{tpu_custom_call.1} parent=1 // pred_region
      %2422 = dma.done [#allocation4], 128
    $region29: #{tpu_custom_call.1} parent=1 // pred_fallthru
      _
    %2423 = vsyncpa [#allocation3], 1
    %2424 = vsyncpa [#allocation6], 1
    %2425 = vsyncpa [#allocation4], 1

</llo_original>
